<compile_context>
chip_gen: v7x
topology: tpu7x:2x2x1
jax: 0.10.0
libtpu: 0.0.40
codegen_flags: <defaults>
</compile_context>

<pallas_src>
import numpy as np
import jax
import jax.numpy as jnp
from jax.experimental import pallas as pl
from jax.experimental.pallas import tpu as pltpu

# ----- MelSpectrogramConfig (fixed, matches the dataclass defaults) -----
SR, WIN, HOP, NFFT = 22050, 1024, 256, 1024
FMIN, FMAX, NMELS = 0, 8000, 80
POWER = 1.0                      # magnitude spectrogram
NFREQ = NFFT // 2 + 1            # 513 one-sided bins
NMELS_PAD = 128                  # pad mel bins to a lane-dense 128 (zero fb columns)
NBLK = NFFT // HOP               # 4 hop-blocks per frame
TM_MAX = 512                     # frame-tile rows: amortizes step overhead on v6e,
                                 # keeps >=2 grid steps for typical clips on v7x, fine on v5e


def _ru(x, m):
    return ((x + m - 1) // m) * m


# ----- librosa.filters.mel (slaney scale, slaney norm) reimplemented in numpy -----
def librosa_mel_fb(sr, n_fft, n_mels, fmin, fmax):
    n_freq = n_fft // 2 + 1
    fftfreqs = np.linspace(0.0, sr / 2.0, n_freq)

    f_sp = 200.0 / 3.0
    min_log_hz = 1000.0
    min_log_mel = min_log_hz / f_sp
    logstep = np.log(6.4) / 27.0

    def hz_to_mel(f):
        f = np.asarray(f, dtype=np.float64)
        lin = f / f_sp
        log = min_log_mel + np.log(np.maximum(f, 1e-10) / min_log_hz) / logstep
        return np.where(f >= min_log_hz, log, lin)

    def mel_to_hz(m):
        m = np.asarray(m, dtype=np.float64)
        lin = f_sp * m
        log = min_log_hz * np.exp(logstep * (m - min_log_mel))
        return np.where(m >= min_log_mel, log, lin)

    mels = np.linspace(hz_to_mel(fmin), hz_to_mel(fmax), n_mels + 2)
    mel_f = mel_to_hz(mels)
    fdiff = np.diff(mel_f)
    ramps = mel_f[:, None] - fftfreqs[None, :]

    weights = np.zeros((n_mels, n_freq), dtype=np.float64)
    for i in range(n_mels):
        lower = -ramps[i] / fdiff[i]
        upper = ramps[i + 2] / fdiff[i + 1]
        weights[i] = np.maximum(0.0, np.minimum(lower, upper))

    enorm = 2.0 / (mel_f[2:n_mels + 2] - mel_f[:n_mels])   # slaney norm
    weights *= enorm[:, None]
    return weights.astype(np.float32)                      # [n_mels, n_freq]


# Only the frequency bins that carry nonzero mel weight matter (fmax=8000 covers ~372 bins).
_MEL_BASIS = librosa_mel_fb(SR, NFFT, NMELS, FMIN, FMAX)               # [n_mels, 513]
_N_USED = int(np.nonzero(_MEL_BASIS.sum(axis=0) > 0)[0][-1]) + 1       # ~372
NFREQ_PAD = ((_N_USED + 127) // 128) * 128                             # 384 (lane-dense)
assert _N_USED <= NFREQ_PAD <= NFREQ


def build_constants():
    """Window-folded truncated DFT [NFFT, 2*NFREQ_PAD] and mel fb [NFREQ_PAD, NMELS_PAD] (bf16)."""
    nvec = np.arange(NFFT, dtype=np.float64)
    # torch.hann_window(periodic=True); WIN == NFFT so no center-padding of the window needed
    window = 0.5 - 0.5 * np.cos(2.0 * np.pi * nvec / WIN)
    kvec = np.arange(NFREQ_PAD, dtype=np.float64)
    ang = 2.0 * np.pi * np.outer(nvec, kvec) / NFFT                    # [NFFT, NFREQ_PAD]

    dft = np.empty((NFFT, 2 * NFREQ_PAD), np.float32)
    dft[:, :NFREQ_PAD] = (window[:, None] * np.cos(ang)).astype(np.float32)   # real part
    dft[:, NFREQ_PAD:] = (window[:, None] * -np.sin(ang)).astype(np.float32)  # imag part of rfft

    fb = np.zeros((NFREQ_PAD, NMELS_PAD), np.float32)
    fb[:_N_USED, :NMELS] = _MEL_BASIS[:, :_N_USED].T                   # torchaudio fb layout
    return jnp.asarray(dft, dtype=jnp.bfloat16), jnp.asarray(fb, dtype=jnp.bfloat16)


# ----- Pallas kernel: hop-block framing + DFT matmuls, magnitude, mel matmul, clamp+log -----
def mel_kernel(blocks_ref, tail_ref, dft_ref, fb_ref, out_ref):
    # blocks_ref: (tm, HOP) bf16 hop-blocks; tail_ref: (1, 8, HOP) bf16 overlap rows for this tile.
    tm = blocks_ref.shape[0]
    # frame t (local) = padded_audio rows t..t+3 of the hop-block view
    full = jnp.concatenate([blocks_ref[...], tail_ref[0]], axis=0).astype(jnp.float32)  # (tm+8, HOP)

    spec = jnp.zeros((tm, 2 * NFREQ_PAD), jnp.float32)
    for k in range(NBLK):                         # 4 accumulated partial matmuls (static unroll)
        lhs = full[k:k + tm, :].astype(jnp.bfloat16)              # row-shifted slab, bf16 for MXU
        spec = spec + jnp.dot(lhs, dft_ref[k * HOP:(k + 1) * HOP, :],
                              preferred_element_type=jnp.float32)  # [tm, 2*NFREQ_PAD]

    re = spec[:, :NFREQ_PAD]
    im = spec[:, NFREQ_PAD:]
    mag = jnp.sqrt(re * re + im * im).astype(jnp.bfloat16)        # |STFT|, power=1
    mel = jnp.dot(mag, fb_ref[...], preferred_element_type=jnp.float32)   # [tm, NMELS_PAD]
    out_ref[...] = jnp.log(jnp.maximum(mel, 1e-5))


# ----- host-side hop-block view (center=True reflect padding, NO 4x frame duplication) -----
def _frame_blocks(audio, tm):
    n = int(audio.shape[0])
    T = n // HOP + 1                       # torch.stft(center=True) frame count
    T_pad = _ru(T, tm)
    padded = jnp.pad(audio.astype(jnp.float32), (NFFT // 2, NFFT // 2), mode="reflect")
    total = (T_pad + 8) * HOP              # enough rows for every tile incl. its 3 overlap rows
    padded = jnp.pad(padded, (0, total - padded.shape[0]))
    blocks_ext = padded.reshape(T_pad + 8, HOP).astype(jnp.bfloat16)   # [T_pad+8, HOP]
    blocks = blocks_ext[:T_pad]                                        # [T_pad, HOP]  (~1x audio)
    n_tiles = T_pad // tm
    # per-tile tail: rows (j+1)*tm .. (j+1)*tm + 7 (only first 3 ever used by valid frames)
    starts = (np.arange(1, n_tiles + 1) * tm)[:, None] + np.arange(8)[None, :]
    tails = blocks_ext[starts]                                         # [n_tiles, 8, HOP]
    return blocks, tails, T, T_pad


def _choose_tm(T_list):
    tm = min(TM_MAX, _ru(max(T_list), 8))
    if len(T_list) == 1 and max(T_list) > 8:
        # single waveform: keep >= 2 grid steps so both v7x TensorCores get work
        tm = min(tm, _ru(-(-max(T_list) // 2), 8))
    return max(tm, 8)


def mel_spectrogram_batch(audios, dft_m, fb):
    """audios: list of [n_samples] float32 -> list of mel [NMELS, T_i] (torchaudio convention)."""
    Ts = [int(a.shape[0]) // HOP + 1 for a in audios]
    tm = _choose_tm(Ts)

    blocks_list, tails_list, T_pads = [], [], []
    for a in audios:
        b, t, _, T_pad = _frame_blocks(a, tm)
        blocks_list.append(b)
        tails_list.append(t)
        T_pads.append(T_pad)
    blocks = jnp.concatenate(blocks_list, axis=0)          # [sum T_pad, HOP]      bf16
    tails = jnp.concatenate(tails_list, axis=0)            # [n_tiles, 8, HOP]     bf16
    total_rows = blocks.shape[0]
    n_tiles = total_rows // tm

    cost = pl.CostEstimate(
        flops=2 * total_rows * NFFT * (2 * NFREQ_PAD) + 2 * total_rows * NFREQ_PAD * NMELS_PAD,
        transcendentals=total_rows * (NFREQ_PAD + NMELS_PAD),
        bytes_accessed=2 * (blocks.size + tails.size + dft_m.size + fb.size)
                       + 4 * total_rows * NMELS_PAD,
    )

    out = pl.pallas_call(
        mel_kernel,
        out_shape=jax.ShapeDtypeStruct((total_rows, NMELS_PAD), jnp.float32),
        grid_spec=pltpu.PrefetchScalarGridSpec(
            num_scalar_prefetch=0,
            grid=(n_tiles,),
            in_specs=[
                pl.BlockSpec((tm, HOP), lambda i: (i, 0)),                    # hop-blocks tile
                pl.BlockSpec((1, 8, HOP), lambda i: (i, 0, 0)),               # per-tile overlap rows
                pl.BlockSpec((NFFT, 2 * NFREQ_PAD), lambda i: (0, 0)),        # win-folded cos|sin (bf16)
                pl.BlockSpec((NFREQ_PAD, NMELS_PAD), lambda i: (0, 0)),       # mel fb (bf16)
            ],
            out_specs=pl.BlockSpec((tm, NMELS_PAD), lambda i: (i, 0)),
        ),
        compiler_params=pltpu.CompilerParams(
            dimension_semantics=("parallel",),     # frame tiles shard across v7x's 2 TCs
            vmem_limit_bytes=32 << 20,             # load-bearing on v5e (16 MiB scoped default)
        ),
        cost_estimate=cost,
    )(blocks, tails, dft_m, fb)

    # one slice + one transpose of the whole slab, then cheap per-waveform column slices
    mel_all = out[:, :NMELS].T                                         # [NMELS, sum T_pad]
    mels, off = [], 0
    for T, T_pad in zip(Ts, T_pads):
        mels.append(mel_all[:, off:off + T])                           # [n_mels, T]
        off += T_pad
    return mels


if __name__ == "__main__":
    dft_m, fb = build_constants()

    # ----- small deterministic example inputs (batch of 2 waveforms, 2048 samples each) -----
    key = jax.random.PRNGKey(0)
    audios = [
        jax.random.normal(jax.random.fold_in(key, i), (2048,), dtype=jnp.float32)
        for i in range(2)
    ]
    data = {"audio": audios}

    # forward: per-batch mel (all waveforms in ONE pallas_call), clamp(1e-5) + log in-kernel
    data["mel"] = mel_spectrogram_batch(data["audio"], dft_m, fb)

    for m in data["mel"]:
        jax.block_until_ready(m)
    assert data["mel"][0].shape == (NMELS, 2048 // HOP + 1)
    assert data["mel"][1].shape == (NMELS, 2048 // HOP + 1)
    print("KERNEL_OK")
</pallas_src>

<mosaic_0001>
module attributes {stable_mosaic.version = 11 : i64} {
  func.func @mel_kernel(%arg0: i32, %arg1: memref<16x256xbf16, #tpu.memory_space<vmem>>, %arg2: memref<1x8x256xbf16, #tpu.memory_space<vmem>>, %arg3: memref<1024x768xbf16, #tpu.memory_space<vmem>>, %arg4: memref<384x128xbf16, #tpu.memory_space<vmem>>, %arg5: memref<16x128xf32, #tpu.memory_space<vmem>>) attributes {dimension_semantics = [#tpu.dimension_semantics<parallel>], iteration_bounds = array<i64: 2>, scalar_prefetch = 0 : i64, scratch_operands = 0 : i64, tpu.core_type = #tpu.core_type<tc>, window_params = [{transform_indices = @transform_0, window_bounds = array<i64: 16, 256>}, {transform_indices = @transform_1, window_bounds = array<i64: 1, 8, 256>}, {pipeline_mode = #tpu.pipeline_mode<synchronous>, transform_indices = @transform_2, window_bounds = array<i64: 1024, 768>}, {pipeline_mode = #tpu.pipeline_mode<synchronous>, transform_indices = @transform_3, window_bounds = array<i64: 384, 128>}, {transform_indices = @transform_4, window_bounds = array<i64: 16, 128>}]} {
    %c0 = arith.constant 0 : index
    %c0_0 = arith.constant 0 : index
    %0 = vector.load %arg1[%c0, %c0_0] : memref<16x256xbf16, #tpu.memory_space<vmem>>, vector<16x256xbf16>
    %c0_1 = arith.constant 0 : index
    %c0_2 = arith.constant 0 : index
    %c0_3 = arith.constant 0 : index
    %1 = vector.load %arg2[%c0_1, %c0_2, %c0_3] : memref<1x8x256xbf16, #tpu.memory_space<vmem>>, vector<1x8x256xbf16>
    %2 = vector.shape_cast %1 : vector<1x8x256xbf16> to vector<8x256xbf16>
    %3 = tpu.concatenate %0, %2 in 0 : vector<16x256xbf16>, vector<8x256xbf16> -> vector<24x256xbf16>
    %4 = arith.extf %3 : vector<24x256xbf16> to vector<24x256xf32>
    %cst = arith.constant 0.000000e+00 : f32
    %5 = vector.broadcast %cst : f32 to vector<16x768xf32>
    %6 = vector.extract_strided_slice %4 {offsets = [0, 0], sizes = [16, 256], strides = [1, 1]} : vector<24x256xf32> to vector<16x256xf32>
    %7 = arith.truncf %6 : vector<16x256xf32> to vector<16x256xbf16>
    %c0_4 = arith.constant 0 : index
    %c0_5 = arith.constant 0 : index
    %8 = vector.load %arg3[%c0_4, %c0_5] : memref<1024x768xbf16, #tpu.memory_space<vmem>>, vector<256x768xbf16>
    %cst_6 = arith.constant dense<0.000000e+00> : vector<16x768xf32>
    %9 = tpu.matmul %7, %8, %cst_6 {dimension_numbers = #tpu.dot_dimension_numbers<[1], [0], [0], [1], [0, 0, 1, 1], [], []>} : vector<16x256xbf16>, vector<256x768xbf16>, vector<16x768xf32> -> vector<16x768xf32>
    %10 = arith.addf %5, %9 : vector<16x768xf32>
    %11 = vector.extract_strided_slice %4 {offsets = [1, 0], sizes = [16, 256], strides = [1, 1]} : vector<24x256xf32> to vector<16x256xf32>
    %12 = arith.truncf %11 : vector<16x256xf32> to vector<16x256xbf16>
    %c256 = arith.constant 256 : index
    %c0_7 = arith.constant 0 : index
    %13 = vector.load %arg3[%c256, %c0_7] : memref<1024x768xbf16, #tpu.memory_space<vmem>>, vector<256x768xbf16>
    %cst_8 = arith.constant dense<0.000000e+00> : vector<16x768xf32>
    %14 = tpu.matmul %12, %13, %cst_8 {dimension_numbers = #tpu.dot_dimension_numbers<[1], [0], [0], [1], [0, 0, 1, 1], [], []>} : vector<16x256xbf16>, vector<256x768xbf16>, vector<16x768xf32> -> vector<16x768xf32>
    %15 = arith.addf %10, %14 : vector<16x768xf32>
    %16 = vector.extract_strided_slice %4 {offsets = [2, 0], sizes = [16, 256], strides = [1, 1]} : vector<24x256xf32> to vector<16x256xf32>
    %17 = arith.truncf %16 : vector<16x256xf32> to vector<16x256xbf16>
    %c512 = arith.constant 512 : index
    %c0_9 = arith.constant 0 : index
    %18 = vector.load %arg3[%c512, %c0_9] : memref<1024x768xbf16, #tpu.memory_space<vmem>>, vector<256x768xbf16>
    %cst_10 = arith.constant dense<0.000000e+00> : vector<16x768xf32>
    %19 = tpu.matmul %17, %18, %cst_10 {dimension_numbers = #tpu.dot_dimension_numbers<[1], [0], [0], [1], [0, 0, 1, 1], [], []>} : vector<16x256xbf16>, vector<256x768xbf16>, vector<16x768xf32> -> vector<16x768xf32>
    %20 = arith.addf %15, %19 : vector<16x768xf32>
    %21 = vector.extract_strided_slice %4 {offsets = [3, 0], sizes = [16, 256], strides = [1, 1]} : vector<24x256xf32> to vector<16x256xf32>
    %22 = arith.truncf %21 : vector<16x256xf32> to vector<16x256xbf16>
    %c768 = arith.constant 768 : index
    %c0_11 = arith.constant 0 : index
    %23 = vector.load %arg3[%c768, %c0_11] : memref<1024x768xbf16, #tpu.memory_space<vmem>>, vector<256x768xbf16>
    %cst_12 = arith.constant dense<0.000000e+00> : vector<16x768xf32>
    %24 = tpu.matmul %22, %23, %cst_12 {dimension_numbers = #tpu.dot_dimension_numbers<[1], [0], [0], [1], [0, 0, 1, 1], [], []>} : vector<16x256xbf16>, vector<256x768xbf16>, vector<16x768xf32> -> vector<16x768xf32>
    %25 = arith.addf %20, %24 : vector<16x768xf32>
    %26 = vector.extract_strided_slice %25 {offsets = [0, 0], sizes = [16, 384], strides = [1, 1]} : vector<16x768xf32> to vector<16x384xf32>
    %27 = vector.extract_strided_slice %25 {offsets = [0, 384], sizes = [16, 384], strides = [1, 1]} : vector<16x768xf32> to vector<16x384xf32>
    %28 = arith.mulf %26, %26 : vector<16x384xf32>
    %29 = arith.mulf %27, %27 : vector<16x384xf32>
    %30 = arith.addf %28, %29 : vector<16x384xf32>
    %31 = math.sqrt %30 : vector<16x384xf32>
    %32 = arith.truncf %31 : vector<16x384xf32> to vector<16x384xbf16>
    %c0_13 = arith.constant 0 : index
    %c0_14 = arith.constant 0 : index
    %33 = vector.load %arg4[%c0_13, %c0_14] : memref<384x128xbf16, #tpu.memory_space<vmem>>, vector<384x128xbf16>
    %cst_15 = arith.constant dense<0.000000e+00> : vector<16x128xf32>
    %34 = tpu.matmul %32, %33, %cst_15 {dimension_numbers = #tpu.dot_dimension_numbers<[1], [0], [0], [1], [0, 0, 1, 1], [], []>} : vector<16x384xbf16>, vector<384x128xbf16>, vector<16x128xf32> -> vector<16x128xf32>
    %cst_16 = arith.constant 9.99999974E-6 : f32
    %35 = vector.broadcast %cst_16 : f32 to vector<16x128xf32>
    %36 = arith.maximumf %34, %35 : vector<16x128xf32>
    %37 = math.log %36 : vector<16x128xf32>
    %c0_17 = arith.constant 0 : index
    %c0_18 = arith.constant 0 : index
    %38 = vector.load %arg5[%c0_17, %c0_18] : memref<16x128xf32, #tpu.memory_space<vmem>>, vector<16x128xf32>
    tpu.vector_store %arg5[%c0_17, %c0_18], %37 {strides = array<i32>} : memref<16x128xf32, #tpu.memory_space<vmem>>, vector<16x128xf32>,
    return
  }
  func.func @transform_0(%arg0: i32) -> (i32, i32) {
    %c0_i32 = arith.constant 0 : i32
    %c0_i32_0 = arith.constant 0 : i32
    return %arg0, %c0_i32 : i32, i32
  }
  func.func @transform_1(%arg0: i32) -> (i32, i32, i32) {
    %c0_i32 = arith.constant 0 : i32
    %c0_i32_0 = arith.constant 0 : i32
    %c0_i32_1 = arith.constant 0 : i32
    return %arg0, %c0_i32, %c0_i32_0 : i32, i32, i32
  }
  func.func @transform_2(%arg0: i32) -> (i32, i32) {
    %c0_i32 = arith.constant 0 : i32
    %c0_i32_0 = arith.constant 0 : i32
    %c0_i32_1 = arith.constant 0 : i32
    return %c0_i32, %c0_i32_0 : i32, i32
  }
  func.func @transform_3(%arg0: i32) -> (i32, i32) {
    %c0_i32 = arith.constant 0 : i32
    %c0_i32_0 = arith.constant 0 : i32
    %c0_i32_1 = arith.constant 0 : i32
    return %c0_i32, %c0_i32_0 : i32, i32
  }
  func.func @transform_4(%arg0: i32) -> (i32, i32) {
    %c0_i32 = arith.constant 0 : i32
    %c0_i32_0 = arith.constant 0 : i32
    return %arg0, %c0_i32 : i32, i32
  }
}

</mosaic_0001>

<llo_original>
// kernel: tpu_custom_call.1
$region0: #{tpu_custom_call.1}
  #allocation0 [shape = 'u32[]', space=smem, size = 0x4, offset = 0x4, fixed_abs, tag = 'smem constant byte address 0x4 - core index']
  #allocation1 [shape = 'u32[144,128]{1,0:T(1,128)}', space=vmem, size = 0x12000, scoped, tag = 'internal scratch']
  %s0 = inlined_call_operand.hbm [shape: bf16[32,256], index: 0, kind: input, shape index: {}]
  %s1 = inlined_call_operand.hbm [shape: bf16[2,8,256], index: 1, kind: input, shape index: {}]
  %s2 = inlined_call_operand.hbm [shape: bf16[1024,768], index: 2, kind: input, shape index: {}]
  %s3 = inlined_call_operand.hbm [shape: bf16[384,128], index: 3, kind: input, shape index: {}]
  %s4 = inlined_call_operand.hbm [shape: f32[32,128], index: 4, kind: output, shape index: {}]
  %s5 = sld [smem:[#allocation0]]
  $region65: #{tpu_custom_call.1} parent=0
    _
  %s7 = ssub.s32 1, %s5
  %s8 = scalar_select 0, %s7, %s5
  $region1: #{tpu_custom_call.1} parent=0
    #allocation2 [shape = 'u8[16384]{0}', space=vmem, size = 0x4000, scoped, tag = 'input window, operand 0']
    #allocation3 [shape = 's32[2]{0}', space=sflag, size = 0x8, scoped, tag = 'scoped memory for tpu_custom_call.1']
    #allocation4 [shape = 's32[2]{0}', space=sflag, size = 0x8, scoped, tag = 'scoped memory for tpu_custom_call.1']
    #allocation5 [shape = 'u8[8192]{0}', space=vmem, size = 0x2000, scoped, tag = 'input window, operand 1']
    #allocation6 [shape = 's32[2]{0}', space=sflag, size = 0x8, scoped, tag = 'scoped memory for tpu_custom_call.1']
    #allocation7 [shape = 'u8[1572864]{0}', space=vmem, size = 0x180000, scoped, tag = 'input window, operand 2, single buffered']
    #allocation8 [shape = 'u8[98304]{0}', space=vmem, size = 0x18000, scoped, tag = 'input window, operand 3, single buffered']
    #allocation9 [shape = 's32[1]{0}', space=sflag, size = 0x4, scoped, tag = 'scoped memory for tpu_custom_call.1']
    #allocation10 [shape = 'u8[16384]{0}', space=vmem, size = 0x4000, scoped, tag = 'output window, operand 0']
    %9 = vsyncpa [#allocation3], 0
    %s10 = scalar_lea.sflag [#allocation3], 1
    %11 = vsyncpa %s10, 0
    %12 = vsyncpa [#allocation6], 0
    %s13 = scalar_lea.sflag [#allocation6], 1
    %14 = vsyncpa %s13, 0
    %15 = vsyncpa [#allocation9], 0
    %16 = vsyncpa [#allocation4], 0
    %s17 = scalar_lea.sflag [#allocation4], 1
    %18 = vsyncpa %s17, 0
    loop: start=0, step=1, limit=4
    $region2: #{tpu_custom_call.1} parent=1 // loop_pre_header
      _
    $region3: #{tpu_custom_call.1} parent=1 // loop_header
      %s20 = sphi 0, %s24
      %p21 = scmp.ge.s32.totalorder %s20, 4
      %s30 = sphi 0, %s32
      %s33 = sphi 0, %s30
      %s34 = sphi 0, %s33
      %s50 = sphi 0, %s34
      %s56 = sphi 0, %s58
      %s59 = sphi 0, %s56
      %s60 = sphi 0, %s59
      %s76 = sphi 0, %s60
      %s80 = sphi 0, %s80
      %s82 = sphi 0, %s80
      %s83 = sphi 0, %s82
      %s97 = sphi 0, %s83
      %s101 = sphi 0, %s101
      %s103 = sphi 0, %s101
      %s104 = sphi 0, %s103
      %s118 = sphi 0, %s104
      %s124 = sphi 0, %s126
      %s127 = sphi 0, %s124
      %s128 = sphi 0, %s127
      %s144 = sphi 0, %s128
    $region4: #{tpu_custom_call.1} parent=1 // loop_header_branch
      %23 = sbr.rel (%p21) target = $region8
    $region5: #{tpu_custom_call.1} parent=1 // loop_body
      %s25 = ssub.s32 %s20, 1
      %s26 = ssub.s32 %s20, 2
      %s27 = sadd.s32 %s20, 1
      %s28 = ssub.s32 %s20, %s27
      %p29 = scmp.eq.s32.totalorder %s28, 0
      %s31 = sadd.s32 %s30, 1
      %s32 = scalar_select %p29, %s30, %s31
      %p35 = pneg %p29
      %p36 = scmp.eq.s32.totalorder %s20, 1
      %p37 = por %p35, %p36
      %p38 = scmp.ne.s32.totalorder %s30, %s33
      %p39 = scmp.eq.s32.totalorder %s20, 0
      %p40 = por %p38, %p39
      %p41 = scmp.ne.s32.totalorder %s30, %s33
      %p42 = scmp.eq.s32.totalorder %s25, 1
      %p43 = por %p41, %p42
      %p44 = scmp.ne.s32.totalorder %s33, %s34
      %p45 = scmp.eq.s32.totalorder %s25, 0
      %p46 = por %p44, %p45
      %p47 = scmp.ne.s32.totalorder %s33, %s34
      %p48 = scmp.eq.s32.totalorder %s26, 1
      %p49 = por %p47, %p48
      %p51 = scmp.ne.s32.totalorder %s34, %s50
      %p52 = scmp.eq.s32.totalorder %s26, 0
      %p53 = por %p51, %p52
      %s54 = ssub.s32 %s20, %s27
      %p55 = scmp.eq.s32.totalorder %s54, 0
      %s57 = sadd.s32 %s56, 1
      %s58 = scalar_select %p55, %s56, %s57
      %p61 = pneg %p55
      %p62 = scmp.eq.s32.totalorder %s20, 1
      %p63 = por %p61, %p62
      %p64 = scmp.ne.s32.totalorder %s56, %s59
      %p65 = scmp.eq.s32.totalorder %s20, 0
      %p66 = por %p64, %p65
      %p67 = scmp.ne.s32.totalorder %s56, %s59
      %p68 = scmp.eq.s32.totalorder %s25, 1
      %p69 = por %p67, %p68
      %p70 = scmp.ne.s32.totalorder %s59, %s60
      %p71 = scmp.eq.s32.totalorder %s25, 0
      %p72 = por %p70, %p71
      %p73 = scmp.ne.s32.totalorder %s59, %s60
      %p74 = scmp.eq.s32.totalorder %s26, 1
      %p75 = por %p73, %p74
      %p77 = scmp.ne.s32.totalorder %s60, %s76
      %p78 = scmp.eq.s32.totalorder %s26, 0
      %p79 = por %p77, %p78
      %s81 = sadd.s32 %s80, 1
      %p84 = scmp.eq.s32.totalorder %s20, 1
      %p85 = scmp.ne.s32.totalorder %s80, %s82
      %p86 = scmp.eq.s32.totalorder %s20, 0
      %p87 = por %p85, %p86
      %p88 = scmp.ne.s32.totalorder %s80, %s82
      %p89 = scmp.eq.s32.totalorder %s25, 1
      %p90 = por %p88, %p89
      %p91 = scmp.ne.s32.totalorder %s82, %s83
      %p92 = scmp.eq.s32.totalorder %s25, 0
      %p93 = por %p91, %p92
      %p94 = scmp.ne.s32.totalorder %s82, %s83
      %p95 = scmp.eq.s32.totalorder %s26, 1
      %p96 = por %p94, %p95
      %p98 = scmp.ne.s32.totalorder %s83, %s97
      %p99 = scmp.eq.s32.totalorder %s26, 0
      %p100 = por %p98, %p99
      %s102 = sadd.s32 %s101, 1
      %p105 = scmp.eq.s32.totalorder %s20, 1
      %p106 = scmp.ne.s32.totalorder %s101, %s103
      %p107 = scmp.eq.s32.totalorder %s20, 0
      %p108 = por %p106, %p107
      %p109 = scmp.ne.s32.totalorder %s101, %s103
      %p110 = scmp.eq.s32.totalorder %s25, 1
      %p111 = por %p109, %p110
      %p112 = scmp.ne.s32.totalorder %s103, %s104
      %p113 = scmp.eq.s32.totalorder %s25, 0
      %p114 = por %p112, %p113
      %p115 = scmp.ne.s32.totalorder %s103, %s104
      %p116 = scmp.eq.s32.totalorder %s26, 1
      %p117 = por %p115, %p116
      %p119 = scmp.ne.s32.totalorder %s104, %s118
      %p120 = scmp.eq.s32.totalorder %s26, 0
      %p121 = por %p119, %p120
      %s122 = ssub.s32 %s20, %s27
      %p123 = scmp.eq.s32.totalorder %s122, 0
      %s125 = sadd.s32 %s124, 1
      %s126 = scalar_select %p123, %s124, %s125
      %p129 = pneg %p123
      %p130 = scmp.eq.s32.totalorder %s20, 1
      %p131 = por %p129, %p130
      %p132 = scmp.ne.s32.totalorder %s124, %s127
      %p133 = scmp.eq.s32.totalorder %s20, 0
      %p134 = por %p132, %p133
      %p135 = scmp.ne.s32.totalorder %s124, %s127
      %p136 = scmp.eq.s32.totalorder %s25, 1
      %p137 = por %p135, %p136
      %p138 = scmp.ne.s32.totalorder %s127, %s128
      %p139 = scmp.eq.s32.totalorder %s25, 0
      %p140 = por %p138, %p139
      %p141 = scmp.ne.s32.totalorder %s127, %s128
      %p142 = scmp.eq.s32.totalorder %s26, 1
      %p143 = por %p141, %p142
      %p145 = scmp.ne.s32.totalorder %s128, %s144
      %p146 = scmp.eq.s32.totalorder %s26, 0
      %p147 = por %p145, %p146
      %p148 = scmp.le.s32.totalorder 1, %s20
      %p149 = scmp.lt.s32.totalorder %s20, 3
      %p150 = pnand %p148, %p149
      %p151 = pneg %p150
      // Predicated region
      $region9: #{tpu_custom_call.1} parent=5 // pred_check
        _
      $region10: #{tpu_custom_call.1} parent=5 // pred_check_branch
        %153 = sbr.rel (%p150) target = $region12
      $region11: #{tpu_custom_call.1} parent=5 // pred_region
        %s154 = ssub.s32 %s20, 1
        // Predicated region
        $region13: #{tpu_custom_call.1} parent=11 // pred_check
          %p155 = pneg %p93
        $region14: #{tpu_custom_call.1} parent=11 // pred_check_branch
          %157 = sbr.rel (%p155) target = $region16
        $region15: #{tpu_custom_call.1} parent=11 // pred_region
          %s159 = ssub.s32 49152, 49152
          %160 = vsyncadd [#allocation6], %s159
          %s161 = sshll.u32 [#allocation7], 4
          %s162 = int_to_ptr.vmem [resolvable:$true] %s161
          %167 = dma.hbm_to_vmem [thread:$0]  %s2, 49152, %s162, [#allocation6], 384, 384, 24
        $region16: #{tpu_custom_call.1} parent=11 // pred_fallthru
          _
        // Predicated region
        $region17: #{tpu_custom_call.1} parent=11 // pred_check
          %p168 = pneg %p114
        $region18: #{tpu_custom_call.1} parent=11 // pred_check_branch
          %170 = sbr.rel (%p168) target = $region20
        $region19: #{tpu_custom_call.1} parent=11 // pred_region
          %s172 = ssub.s32 3072, 3072
          %173 = vsyncadd [#allocation9], %s172
          %s174 = sshll.u32 [#allocation8], 4
          %s175 = int_to_ptr.vmem [resolvable:$true] %s174
          %180 = dma.hbm_to_vmem [thread:$0]  %s3, 3072, %s175, [#allocation9], 64, 64, 4
        $region20: #{tpu_custom_call.1} parent=11 // pred_fallthru
          _
      $region12: #{tpu_custom_call.1} parent=5 // pred_fallthru
        _
      %p181 = scmp.lt.s32.totalorder %s20, 2
      // Predicated region
      $region21: #{tpu_custom_call.1} parent=5 // pred_check
        %p182 = pneg %p181
      $region22: #{tpu_custom_call.1} parent=5 // pred_check_branch
        %184 = sbr.rel (%p182) target = $region24
      $region23: #{tpu_custom_call.1} parent=5 // pred_region
        // Predicated region
        $region25: #{tpu_custom_call.1} parent=23 // pred_check
          %p185 = pneg %p40
        $region26: #{tpu_custom_call.1} parent=23 // pred_check_branch
          %187 = sbr.rel (%p185) target = $region28
        $region27: #{tpu_custom_call.1} parent=23 // pred_region
          %s188 = sand.u32 %s30, 1
          %s189 = scalar_lea.sflag [#allocation3], %s188
          %s190 = sand.u32 %s30, 1
          %s191 = smul.addr %s190, 16
          %s192 = scalar_lea.vmem [#allocation2], %s191
          %s193 = smul.u32 2, %s20
          %s195 = ssub.s32 256, 256
          %196 = vsyncadd %s189, %s195
          %s197 = smul.addr %s193, 2
          %s198 = smul.addr %s197, 64
          %s199 = scalar_lea.hbm %s0, %s198
          %s200 = sshll.u32 %s192, 4
          %s201 = int_to_ptr.vmem [resolvable:$true] %s200
          %206 = dma.hbm_to_vmem [thread:$0]  %s199, 256, %s201, %s189, 128, 128, 8
        $region28: #{tpu_custom_call.1} parent=23 // pred_fallthru
          _
        // Predicated region
        $region29: #{tpu_custom_call.1} parent=23 // pred_check
          %p207 = pneg %p66
        $region30: #{tpu_custom_call.1} parent=23 // pred_check_branch
          %209 = sbr.rel (%p207) target = $region32
        $region31: #{tpu_custom_call.1} parent=23 // pred_region
          %s210 = sand.u32 %s20, 1
          %s211 = scalar_lea.sflag [#allocation6], %s210
          %s212 = sand.u32 %s56, 1
          %s213 = smul.addr %s212, 8
          %s214 = scalar_lea.vmem [#allocation5], %s213
          %s216 = ssub.s32 128, 128
          %217 = vsyncadd %s211, %s216
          %s218 = smul.addr %s20, 2
          %s219 = smul.addr %s218, 64
          %s220 = scalar_lea.hbm %s1, %s219
          %s222 = sshll.u32 %s214, 4
          %s223 = int_to_ptr.vmem [resolvable:$true] %s222
          %225 = dma.hbm_to_vmem [thread:$0]  %s220, 128, %s223, %s211
        $region32: #{tpu_custom_call.1} parent=23 // pred_fallthru
          _
      $region24: #{tpu_custom_call.1} parent=5 // pred_fallthru
        _
      %p226 = scmp.le.s32.totalorder 1, %s20
      %p227 = scmp.lt.s32.totalorder %s20, 3
      %p228 = pnand %p226, %p227
      %p229 = pneg %p228
      // Predicated region
      $region33: #{tpu_custom_call.1} parent=5 // pred_check
        _
      $region34: #{tpu_custom_call.1} parent=5 // pred_check_branch
        %231 = sbr.rel (%p228) target = $region36
      $region35: #{tpu_custom_call.1} parent=5 // pred_region
        %s232 = ssub.s32 %s20, 1
        %s233 = sand.u32 %s33, 1
        %s234 = scalar_lea.sflag [#allocation3], %s233
        %s235 = sand.u32 %s33, 1
        %s236 = smul.addr %s235, 16
        %s237 = scalar_lea.vmem [#allocation2], %s236
        // Predicated region
        $region37: #{tpu_custom_call.1} parent=35 // pred_check
          %p238 = pneg %p46
        $region38: #{tpu_custom_call.1} parent=35 // pred_check_branch
          %240 = sbr.rel (%p238) target = $region40
        $region39: #{tpu_custom_call.1} parent=35 // pred_region
          %241 = dma.done %s234, 256
        $region40: #{tpu_custom_call.1} parent=35 // pred_fallthru
          _
        %s242 = sand.u32 %s25, 1
        %s243 = scalar_lea.sflag [#allocation6], %s242
        %s244 = sand.u32 %s59, 1
        %s245 = smul.addr %s244, 8
        %s246 = scalar_lea.vmem [#allocation5], %s245
        // Predicated region
        $region41: #{tpu_custom_call.1} parent=35 // pred_check
          %p247 = pneg %p72
        $region42: #{tpu_custom_call.1} parent=35 // pred_check_branch
          %249 = sbr.rel (%p247) target = $region44
        $region43: #{tpu_custom_call.1} parent=35 // pred_region
          %250 = dma.done %s243, 128
        $region44: #{tpu_custom_call.1} parent=35 // pred_fallthru
          _
        // Predicated region
        $region45: #{tpu_custom_call.1} parent=35 // pred_check
          %p251 = pneg %p93
        $region46: #{tpu_custom_call.1} parent=35 // pred_check_branch
          %253 = sbr.rel (%p251) target = $region48
        $region47: #{tpu_custom_call.1} parent=35 // pred_region
          %254 = dma.done [#allocation6], 49152
        $region48: #{tpu_custom_call.1} parent=35 // pred_fallthru
          _
        // Predicated region
        $region49: #{tpu_custom_call.1} parent=35 // pred_check
          %p255 = pneg %p114
        $region50: #{tpu_custom_call.1} parent=35 // pred_check_branch
          %257 = sbr.rel (%p255) target = $region52
        $region51: #{tpu_custom_call.1} parent=35 // pred_region
          %258 = dma.done [#allocation9], 3072
        $region52: #{tpu_custom_call.1} parent=35 // pred_fallthru
          _
        %s259 = sand.u32 %s33, 1
        %s260 = scalar_lea.sflag [#allocation3], %s259
        %s261 = sand.u32 %s33, 1
        %s262 = smul.addr %s261, 16
        %s263 = scalar_lea.vmem [#allocation2], %s262
        %p264 = pneg %p46
        %p265 = pneg %p43
        %s266 = sand.u32 %s25, 1
        %s267 = scalar_lea.sflag [#allocation6], %s266
        %s268 = sand.u32 %s59, 1
        %s269 = smul.addr %s268, 8
        %s270 = scalar_lea.vmem [#allocation5], %s269
        %p271 = pneg %p72
        %p272 = pneg %p69
        %p273 = pneg %p93
        %p274 = pneg %p90
        %p275 = pneg %p114
        %p276 = pneg %p111
        %p277 = pneg %p140
        %p278 = pneg %p137
        %s279 = sand.u32 %s127, 1
        %s280 = scalar_lea.sflag [#allocation4], %s279
        %s281 = sand.u32 %s127, 1
        %s282 = smul.addr %s281, 16
        %s283 = scalar_lea.vmem [#allocation10], %s282
        %s284 = smul.u32 2, %s25
        %s285 = smul.u32 2, %s25
        %v287 = vld [vmem:[%s237] sm:$0xff]
        %v288 = vld [vmem:[%s237 + $0x8] sm:$0xff]
        %v289 = vld [vmem:[%s246] sm:$0xff]
        %v292 = vunpack.c.l.b16 %v287
        %v293 = vunpack.c.h.b16 %v287
        %v294 = vunpack.c.l.b16 %v288
        %v295 = vunpack.c.h.b16 %v288
        %v296 = vpack.c.b16 %v294, %v292
        %v297 = vpack.c.b16 %v295, %v293
        %v301 = vunpack.c.l.b16 %v289
        %v302 = vunpack.c.h.b16 %v289
        %v303 = vpack.c.b16 %v301, %v301
        %v304 = vpack.c.b16 %v302, %v302
        %v307 = vunpack.c.l.bf16 %v296
        %v308 = vunpack.c.l.bf16 %v297
        %v309 = vunpack.c.h.bf16 %v296
        %v310 = vunpack.c.h.bf16 %v297
        %v311 = vunpack.c.l.bf16 %v303
        %v312 = vunpack.c.l.bf16 %v304
        %v313 = vpack.c.bf16 %v309, %v307
        %v314 = vpack.c.bf16 %v310, %v308
        %v315 = vld [vmem:[#allocation7] sm:$0xff]
        %v316 = vld [vmem:[#allocation7 + $0x8] sm:$0xff]
        %v317 = vld [vmem:[#allocation7 + $0x10] sm:$0xff]
        %v318 = vld [vmem:[#allocation7 + $0x18] sm:$0xff]
        %v319 = vld [vmem:[#allocation7 + $0x20] sm:$0xff]
        %v320 = vld [vmem:[#allocation7 + $0x28] sm:$0xff]
        %v321 = vld [vmem:[#allocation7 + $0x30] sm:$0xff]
        %v322 = vld [vmem:[#allocation7 + $0x38] sm:$0xff]
        %v323 = vld [vmem:[#allocation7 + $0x40] sm:$0xff]
        %v324 = vld [vmem:[#allocation7 + $0x48] sm:$0xff]
        %v325 = vld [vmem:[#allocation7 + $0x50] sm:$0xff]
        %v326 = vld [vmem:[#allocation7 + $0x58] sm:$0xff]
        %v327 = vld [vmem:[#allocation7 + $0x60] sm:$0xff]
        %v328 = vld [vmem:[#allocation7 + $0x68] sm:$0xff]
        %v329 = vld [vmem:[#allocation7 + $0x70] sm:$0xff]
        %v330 = vld [vmem:[#allocation7 + $0x78] sm:$0xff]
        %v331 = vld [vmem:[#allocation7 + $0x80] sm:$0xff]
        %v332 = vld [vmem:[#allocation7 + $0x88] sm:$0xff]
        %v333 = vld [vmem:[#allocation7 + $0x90] sm:$0xff]
        %v334 = vld [vmem:[#allocation7 + $0x98] sm:$0xff]
        %v335 = vld [vmem:[#allocation7 + $0xa0] sm:$0xff]
        %v336 = vld [vmem:[#allocation7 + $0xa8] sm:$0xff]
        %v337 = vld [vmem:[#allocation7 + $0xb0] sm:$0xff]
        %v338 = vld [vmem:[#allocation7 + $0xb8] sm:$0xff]
        %v339 = vld [vmem:[#allocation7 + $0xc0] sm:$0xff]
        %v340 = vld [vmem:[#allocation7 + $0xc8] sm:$0xff]
        %v341 = vld [vmem:[#allocation7 + $0xd0] sm:$0xff]
        %v342 = vld [vmem:[#allocation7 + $0xd8] sm:$0xff]
        %v343 = vld [vmem:[#allocation7 + $0xe0] sm:$0xff]
        %v344 = vld [vmem:[#allocation7 + $0xe8] sm:$0xff]
        %v345 = vld [vmem:[#allocation7 + $0xf0] sm:$0xff]
        %v346 = vld [vmem:[#allocation7 + $0xf8] sm:$0xff]
        %v347 = vld [vmem:[#allocation7 + $0x100] sm:$0xff]
        %v348 = vld [vmem:[#allocation7 + $0x108] sm:$0xff]
        %v349 = vld [vmem:[#allocation7 + $0x110] sm:$0xff]
        %v350 = vld [vmem:[#allocation7 + $0x118] sm:$0xff]
        %v351 = vld [vmem:[#allocation7 + $0x120] sm:$0xff]
        %v352 = vld [vmem:[#allocation7 + $0x128] sm:$0xff]
        %v353 = vld [vmem:[#allocation7 + $0x130] sm:$0xff]
        %v354 = vld [vmem:[#allocation7 + $0x138] sm:$0xff]
        %v355 = vld [vmem:[#allocation7 + $0x140] sm:$0xff]
        %v356 = vld [vmem:[#allocation7 + $0x148] sm:$0xff]
        %v357 = vld [vmem:[#allocation7 + $0x150] sm:$0xff]
        %v358 = vld [vmem:[#allocation7 + $0x158] sm:$0xff]
        %v359 = vld [vmem:[#allocation7 + $0x160] sm:$0xff]
        %v360 = vld [vmem:[#allocation7 + $0x168] sm:$0xff]
        %v361 = vld [vmem:[#allocation7 + $0x170] sm:$0xff]
        %v362 = vld [vmem:[#allocation7 + $0x178] sm:$0xff]
        %v363 = vld [vmem:[#allocation7 + $0x180] sm:$0xff]
        %v364 = vld [vmem:[#allocation7 + $0x188] sm:$0xff]
        %v365 = vld [vmem:[#allocation7 + $0x190] sm:$0xff]
        %v366 = vld [vmem:[#allocation7 + $0x198] sm:$0xff]
        %v367 = vld [vmem:[#allocation7 + $0x1a0] sm:$0xff]
        %v368 = vld [vmem:[#allocation7 + $0x1a8] sm:$0xff]
        %v369 = vld [vmem:[#allocation7 + $0x1b0] sm:$0xff]
        %v370 = vld [vmem:[#allocation7 + $0x1b8] sm:$0xff]
        %v371 = vld [vmem:[#allocation7 + $0x1c0] sm:$0xff]
        %v372 = vld [vmem:[#allocation7 + $0x1c8] sm:$0xff]
        %v373 = vld [vmem:[#allocation7 + $0x1d0] sm:$0xff]
        %v374 = vld [vmem:[#allocation7 + $0x1d8] sm:$0xff]
        %v375 = vld [vmem:[#allocation7 + $0x1e0] sm:$0xff]
        %v376 = vld [vmem:[#allocation7 + $0x1e8] sm:$0xff]
        %v377 = vld [vmem:[#allocation7 + $0x1f0] sm:$0xff]
        %v378 = vld [vmem:[#allocation7 + $0x1f8] sm:$0xff]
        %v379 = vld [vmem:[#allocation7 + $0x200] sm:$0xff]
        %v380 = vld [vmem:[#allocation7 + $0x208] sm:$0xff]
        %v381 = vld [vmem:[#allocation7 + $0x210] sm:$0xff]
        %v382 = vld [vmem:[#allocation7 + $0x218] sm:$0xff]
        %v383 = vld [vmem:[#allocation7 + $0x220] sm:$0xff]
        %v384 = vld [vmem:[#allocation7 + $0x228] sm:$0xff]
        %v385 = vld [vmem:[#allocation7 + $0x230] sm:$0xff]
        %v386 = vld [vmem:[#allocation7 + $0x238] sm:$0xff]
        %v387 = vld [vmem:[#allocation7 + $0x240] sm:$0xff]
        %v388 = vld [vmem:[#allocation7 + $0x248] sm:$0xff]
        %v389 = vld [vmem:[#allocation7 + $0x250] sm:$0xff]
        %v390 = vld [vmem:[#allocation7 + $0x258] sm:$0xff]
        %v391 = vld [vmem:[#allocation7 + $0x260] sm:$0xff]
        %v392 = vld [vmem:[#allocation7 + $0x268] sm:$0xff]
        %v393 = vld [vmem:[#allocation7 + $0x270] sm:$0xff]
        %v394 = vld [vmem:[#allocation7 + $0x278] sm:$0xff]
        %v395 = vld [vmem:[#allocation7 + $0x280] sm:$0xff]
        %v396 = vld [vmem:[#allocation7 + $0x288] sm:$0xff]
        %v397 = vld [vmem:[#allocation7 + $0x290] sm:$0xff]
        %v398 = vld [vmem:[#allocation7 + $0x298] sm:$0xff]
        %v399 = vld [vmem:[#allocation7 + $0x2a0] sm:$0xff]
        %v400 = vld [vmem:[#allocation7 + $0x2a8] sm:$0xff]
        %v401 = vld [vmem:[#allocation7 + $0x2b0] sm:$0xff]
        %v402 = vld [vmem:[#allocation7 + $0x2b8] sm:$0xff]
        %v403 = vld [vmem:[#allocation7 + $0x2c0] sm:$0xff]
        %v404 = vld [vmem:[#allocation7 + $0x2c8] sm:$0xff]
        %v405 = vld [vmem:[#allocation7 + $0x2d0] sm:$0xff]
        %v406 = vld [vmem:[#allocation7 + $0x2d8] sm:$0xff]
        %v407 = vld [vmem:[#allocation7 + $0x2e0] sm:$0xff]
        %v408 = vld [vmem:[#allocation7 + $0x2e8] sm:$0xff]
        %v409 = vld [vmem:[#allocation7 + $0x2f0] sm:$0xff]
        %v410 = vld [vmem:[#allocation7 + $0x2f8] sm:$0xff]
        %v411 = vpack.c.bf16 %v311, %v311
        %v412 = vpack.c.bf16 %v312, %v312
        %v413 = vld [vmem:[#allocation7 + $0x300] sm:$0xff]
        %v414 = vld [vmem:[#allocation7 + $0x308] sm:$0xff]
        %v415 = vld [vmem:[#allocation7 + $0x310] sm:$0xff]
        %v416 = vld [vmem:[#allocation7 + $0x318] sm:$0xff]
        %v417 = vld [vmem:[#allocation7 + $0x320] sm:$0xff]
        %v418 = vld [vmem:[#allocation7 + $0x328] sm:$0xff]
        %v419 = vld [vmem:[#allocation7 + $0x330] sm:$0xff]
        %v420 = vld [vmem:[#allocation7 + $0x338] sm:$0xff]
        %v421 = vld [vmem:[#allocation7 + $0x340] sm:$0xff]
        %v422 = vld [vmem:[#allocation7 + $0x348] sm:$0xff]
        %v423 = vld [vmem:[#allocation7 + $0x350] sm:$0xff]
        %v424 = vld [vmem:[#allocation7 + $0x358] sm:$0xff]
        %v425 = vld [vmem:[#allocation7 + $0x360] sm:$0xff]
        %v426 = vld [vmem:[#allocation7 + $0x368] sm:$0xff]
        %v427 = vld [vmem:[#allocation7 + $0x370] sm:$0xff]
        %v428 = vld [vmem:[#allocation7 + $0x378] sm:$0xff]
        %v429 = vld [vmem:[#allocation7 + $0x380] sm:$0xff]
        %v430 = vld [vmem:[#allocation7 + $0x388] sm:$0xff]
        %v431 = vld [vmem:[#allocation7 + $0x390] sm:$0xff]
        %v432 = vld [vmem:[#allocation7 + $0x398] sm:$0xff]
        %v433 = vld [vmem:[#allocation7 + $0x3a0] sm:$0xff]
        %v434 = vld [vmem:[#allocation7 + $0x3a8] sm:$0xff]
        %v435 = vld [vmem:[#allocation7 + $0x3b0] sm:$0xff]
        %v436 = vld [vmem:[#allocation7 + $0x3b8] sm:$0xff]
        %v437 = vld [vmem:[#allocation7 + $0x3c0] sm:$0xff]
        %v438 = vld [vmem:[#allocation7 + $0x3c8] sm:$0xff]
        %v439 = vld [vmem:[#allocation7 + $0x3d0] sm:$0xff]
        %v440 = vld [vmem:[#allocation7 + $0x3d8] sm:$0xff]
        %v441 = vld [vmem:[#allocation7 + $0x3e0] sm:$0xff]
        %v442 = vld [vmem:[#allocation7 + $0x3e8] sm:$0xff]
        %v443 = vld [vmem:[#allocation7 + $0x3f0] sm:$0xff]
        %v444 = vld [vmem:[#allocation7 + $0x3f8] sm:$0xff]
        %v445 = vld [vmem:[#allocation7 + $0x400] sm:$0xff]
        %v446 = vld [vmem:[#allocation7 + $0x408] sm:$0xff]
        %v447 = vld [vmem:[#allocation7 + $0x410] sm:$0xff]
        %v448 = vld [vmem:[#allocation7 + $0x418] sm:$0xff]
        %v449 = vld [vmem:[#allocation7 + $0x420] sm:$0xff]
        %v450 = vld [vmem:[#allocation7 + $0x428] sm:$0xff]
        %v451 = vld [vmem:[#allocation7 + $0x430] sm:$0xff]
        %v452 = vld [vmem:[#allocation7 + $0x438] sm:$0xff]
        %v453 = vld [vmem:[#allocation7 + $0x440] sm:$0xff]
        %v454 = vld [vmem:[#allocation7 + $0x448] sm:$0xff]
        %v455 = vld [vmem:[#allocation7 + $0x450] sm:$0xff]
        %v456 = vld [vmem:[#allocation7 + $0x458] sm:$0xff]
        %v457 = vld [vmem:[#allocation7 + $0x460] sm:$0xff]
        %v458 = vld [vmem:[#allocation7 + $0x468] sm:$0xff]
        %v459 = vld [vmem:[#allocation7 + $0x470] sm:$0xff]
        %v460 = vld [vmem:[#allocation7 + $0x478] sm:$0xff]
        %v461 = vld [vmem:[#allocation7 + $0x480] sm:$0xff]
        %v462 = vld [vmem:[#allocation7 + $0x488] sm:$0xff]
        %v463 = vld [vmem:[#allocation7 + $0x490] sm:$0xff]
        %v464 = vld [vmem:[#allocation7 + $0x498] sm:$0xff]
        %v465 = vld [vmem:[#allocation7 + $0x4a0] sm:$0xff]
        %v466 = vld [vmem:[#allocation7 + $0x4a8] sm:$0xff]
        %v467 = vld [vmem:[#allocation7 + $0x4b0] sm:$0xff]
        %v468 = vld [vmem:[#allocation7 + $0x4b8] sm:$0xff]
        %v469 = vld [vmem:[#allocation7 + $0x4c0] sm:$0xff]
        %v470 = vld [vmem:[#allocation7 + $0x4c8] sm:$0xff]
        %v471 = vld [vmem:[#allocation7 + $0x4d0] sm:$0xff]
        %v472 = vld [vmem:[#allocation7 + $0x4d8] sm:$0xff]
        %v473 = vld [vmem:[#allocation7 + $0x4e0] sm:$0xff]
        %v474 = vld [vmem:[#allocation7 + $0x4e8] sm:$0xff]
        %v475 = vld [vmem:[#allocation7 + $0x4f0] sm:$0xff]
        %v476 = vld [vmem:[#allocation7 + $0x4f8] sm:$0xff]
        %v477 = vld [vmem:[#allocation7 + $0x500] sm:$0xff]
        %v478 = vld [vmem:[#allocation7 + $0x508] sm:$0xff]
        %v479 = vld [vmem:[#allocation7 + $0x510] sm:$0xff]
        %v480 = vld [vmem:[#allocation7 + $0x518] sm:$0xff]
        %v481 = vld [vmem:[#allocation7 + $0x520] sm:$0xff]
        %v482 = vld [vmem:[#allocation7 + $0x528] sm:$0xff]
        %v483 = vld [vmem:[#allocation7 + $0x530] sm:$0xff]
        %v484 = vld [vmem:[#allocation7 + $0x538] sm:$0xff]
        %v485 = vld [vmem:[#allocation7 + $0x540] sm:$0xff]
        %v486 = vld [vmem:[#allocation7 + $0x548] sm:$0xff]
        %v487 = vld [vmem:[#allocation7 + $0x550] sm:$0xff]
        %v488 = vld [vmem:[#allocation7 + $0x558] sm:$0xff]
        %v489 = vld [vmem:[#allocation7 + $0x560] sm:$0xff]
        %v490 = vld [vmem:[#allocation7 + $0x568] sm:$0xff]
        %v491 = vld [vmem:[#allocation7 + $0x570] sm:$0xff]
        %v492 = vld [vmem:[#allocation7 + $0x578] sm:$0xff]
        %v493 = vld [vmem:[#allocation7 + $0x580] sm:$0xff]
        %v494 = vld [vmem:[#allocation7 + $0x588] sm:$0xff]
        %v495 = vld [vmem:[#allocation7 + $0x590] sm:$0xff]
        %v496 = vld [vmem:[#allocation7 + $0x598] sm:$0xff]
        %v497 = vld [vmem:[#allocation7 + $0x5a0] sm:$0xff]
        %v498 = vld [vmem:[#allocation7 + $0x5a8] sm:$0xff]
        %v499 = vld [vmem:[#allocation7 + $0x5b0] sm:$0xff]
        %v500 = vld [vmem:[#allocation7 + $0x5b8] sm:$0xff]
        %v501 = vld [vmem:[#allocation7 + $0x5c0] sm:$0xff]
        %v502 = vld [vmem:[#allocation7 + $0x5c8] sm:$0xff]
        %v503 = vld [vmem:[#allocation7 + $0x5d0] sm:$0xff]
        %v504 = vld [vmem:[#allocation7 + $0x5d8] sm:$0xff]
        %v505 = vld [vmem:[#allocation7 + $0x5e0] sm:$0xff]
        %v506 = vld [vmem:[#allocation7 + $0x5e8] sm:$0xff]
        %v507 = vld [vmem:[#allocation7 + $0x5f0] sm:$0xff]
        %v508 = vld [vmem:[#allocation7 + $0x5f8] sm:$0xff]
        %vm509 = vsmask.f32 7424
        %v511 = vshrl.u32 %v313, 16
        %v513 = vshll.u32 %v313, 16
        %v515 = vrot.slane %v513, 1
        %v516 = vor.u32 %v511, %v515
        %v518 = vshll.u32 %v411, 16
        %v520 = vrot.slane %v518, 1
        %v521 = vsel %vm509, %v516, %v520
        %v523 = vshrl.u32 %v314, 16
        %v525 = vshll.u32 %v314, 16
        %v527 = vrot.slane %v525, 1
        %v528 = vor.u32 %v523, %v527
        %v530 = vshll.u32 %v412, 16
        %v532 = vrot.slane %v530, 1
        %v533 = vsel %vm509, %v528, %v532
        %v632 = vunpack.c.l.b16 %v413
        %v633 = vunpack.c.h.b16 %v413
        %v634 = vunpack.c.l.b16 %v414
        %v635 = vunpack.c.h.b16 %v414
        %v636 = vunpack.c.l.b16 %v415
        %v637 = vunpack.c.h.b16 %v415
        %v638 = vunpack.c.l.b16 %v416
        %v639 = vunpack.c.h.b16 %v416
        %v640 = vunpack.c.l.b16 %v417
        %v641 = vunpack.c.h.b16 %v417
        %v642 = vunpack.c.l.b16 %v418
        %v643 = vunpack.c.h.b16 %v418
        %v644 = vunpack.c.l.b16 %v419
        %v645 = vunpack.c.h.b16 %v419
        %v646 = vunpack.c.l.b16 %v420
        %v647 = vunpack.c.h.b16 %v420
        %v648 = vunpack.c.l.b16 %v421
        %v649 = vunpack.c.h.b16 %v421
        %v650 = vunpack.c.l.b16 %v422
        %v651 = vunpack.c.h.b16 %v422
        %v652 = vunpack.c.l.b16 %v423
        %v653 = vunpack.c.h.b16 %v423
        %v654 = vunpack.c.l.b16 %v424
        %v655 = vunpack.c.h.b16 %v424
        %v656 = vunpack.c.l.b16 %v425
        %v657 = vunpack.c.h.b16 %v425
        %v658 = vunpack.c.l.b16 %v426
        %v659 = vunpack.c.h.b16 %v426
        %v660 = vunpack.c.l.b16 %v427
        %v661 = vunpack.c.h.b16 %v427
        %v662 = vunpack.c.l.b16 %v428
        %v663 = vunpack.c.h.b16 %v428
        %v664 = vunpack.c.l.b16 %v429
        %v665 = vunpack.c.h.b16 %v429
        %v666 = vunpack.c.l.b16 %v430
        %v667 = vunpack.c.h.b16 %v430
        %v668 = vunpack.c.l.b16 %v431
        %v669 = vunpack.c.h.b16 %v431
        %v670 = vunpack.c.l.b16 %v432
        %v671 = vunpack.c.h.b16 %v432
        %v672 = vunpack.c.l.b16 %v433
        %v673 = vunpack.c.h.b16 %v433
        %v674 = vunpack.c.l.b16 %v434
        %v675 = vunpack.c.h.b16 %v434
        %v676 = vunpack.c.l.b16 %v435
        %v677 = vunpack.c.h.b16 %v435
        %v678 = vunpack.c.l.b16 %v436
        %v679 = vunpack.c.h.b16 %v436
        %v680 = vunpack.c.l.b16 %v437
        %v681 = vunpack.c.h.b16 %v437
        %v682 = vunpack.c.l.b16 %v438
        %v683 = vunpack.c.h.b16 %v438
        %v684 = vunpack.c.l.b16 %v439
        %v685 = vunpack.c.h.b16 %v439
        %v686 = vunpack.c.l.b16 %v440
        %v687 = vunpack.c.h.b16 %v440
        %v688 = vunpack.c.l.b16 %v441
        %v689 = vunpack.c.h.b16 %v441
        %v690 = vunpack.c.l.b16 %v442
        %v691 = vunpack.c.h.b16 %v442
        %v692 = vunpack.c.l.b16 %v443
        %v693 = vunpack.c.h.b16 %v443
        %v694 = vunpack.c.l.b16 %v444
        %v695 = vunpack.c.h.b16 %v444
        %v696 = vunpack.c.l.b16 %v445
        %v697 = vunpack.c.h.b16 %v445
        %v698 = vunpack.c.l.b16 %v446
        %v699 = vunpack.c.h.b16 %v446
        %v700 = vunpack.c.l.b16 %v447
        %v701 = vunpack.c.h.b16 %v447
        %v702 = vunpack.c.l.b16 %v448
        %v703 = vunpack.c.h.b16 %v448
        %v704 = vunpack.c.l.b16 %v449
        %v705 = vunpack.c.h.b16 %v449
        %v706 = vunpack.c.l.b16 %v450
        %v707 = vunpack.c.h.b16 %v450
        %v708 = vunpack.c.l.b16 %v451
        %v709 = vunpack.c.h.b16 %v451
        %v710 = vunpack.c.l.b16 %v452
        %v711 = vunpack.c.h.b16 %v452
        %v712 = vunpack.c.l.b16 %v453
        %v713 = vunpack.c.h.b16 %v453
        %v714 = vunpack.c.l.b16 %v454
        %v715 = vunpack.c.h.b16 %v454
        %v716 = vunpack.c.l.b16 %v455
        %v717 = vunpack.c.h.b16 %v455
        %v718 = vunpack.c.l.b16 %v456
        %v719 = vunpack.c.h.b16 %v456
        %v720 = vunpack.c.l.b16 %v457
        %v721 = vunpack.c.h.b16 %v457
        %v722 = vunpack.c.l.b16 %v458
        %v723 = vunpack.c.h.b16 %v458
        %v724 = vunpack.c.l.b16 %v459
        %v725 = vunpack.c.h.b16 %v459
        %v726 = vunpack.c.l.b16 %v460
        %v727 = vunpack.c.h.b16 %v460
        %v728 = vunpack.c.l.b16 %v461
        %v729 = vunpack.c.h.b16 %v461
        %v730 = vunpack.c.l.b16 %v462
        %v731 = vunpack.c.h.b16 %v462
        %v732 = vunpack.c.l.b16 %v463
        %v733 = vunpack.c.h.b16 %v463
        %v734 = vunpack.c.l.b16 %v464
        %v735 = vunpack.c.h.b16 %v464
        %v736 = vunpack.c.l.b16 %v465
        %v737 = vunpack.c.h.b16 %v465
        %v738 = vunpack.c.l.b16 %v466
        %v739 = vunpack.c.h.b16 %v466
        %v740 = vunpack.c.l.b16 %v467
        %v741 = vunpack.c.h.b16 %v467
        %v742 = vunpack.c.l.b16 %v468
        %v743 = vunpack.c.h.b16 %v468
        %v744 = vunpack.c.l.b16 %v469
        %v745 = vunpack.c.h.b16 %v469
        %v746 = vunpack.c.l.b16 %v470
        %v747 = vunpack.c.h.b16 %v470
        %v748 = vunpack.c.l.b16 %v471
        %v749 = vunpack.c.h.b16 %v471
        %v750 = vunpack.c.l.b16 %v472
        %v751 = vunpack.c.h.b16 %v472
        %v752 = vunpack.c.l.b16 %v473
        %v753 = vunpack.c.h.b16 %v473
        %v754 = vunpack.c.l.b16 %v474
        %v755 = vunpack.c.h.b16 %v474
        %v756 = vunpack.c.l.b16 %v475
        %v757 = vunpack.c.h.b16 %v475
        %v758 = vunpack.c.l.b16 %v476
        %v759 = vunpack.c.h.b16 %v476
        %v760 = vunpack.c.l.b16 %v477
        %v761 = vunpack.c.h.b16 %v477
        %v762 = vunpack.c.l.b16 %v478
        %v763 = vunpack.c.h.b16 %v478
        %v764 = vunpack.c.l.b16 %v479
        %v765 = vunpack.c.h.b16 %v479
        %v766 = vunpack.c.l.b16 %v480
        %v767 = vunpack.c.h.b16 %v480
        %v768 = vunpack.c.l.b16 %v481
        %v769 = vunpack.c.h.b16 %v481
        %v770 = vunpack.c.l.b16 %v482
        %v771 = vunpack.c.h.b16 %v482
        %v772 = vunpack.c.l.b16 %v483
        %v773 = vunpack.c.h.b16 %v483
        %v774 = vunpack.c.l.b16 %v484
        %v775 = vunpack.c.h.b16 %v484
        %v776 = vunpack.c.l.b16 %v485
        %v777 = vunpack.c.h.b16 %v485
        %v778 = vunpack.c.l.b16 %v486
        %v779 = vunpack.c.h.b16 %v486
        %v780 = vunpack.c.l.b16 %v487
        %v781 = vunpack.c.h.b16 %v487
        %v782 = vunpack.c.l.b16 %v488
        %v783 = vunpack.c.h.b16 %v488
        %v784 = vunpack.c.l.b16 %v489
        %v785 = vunpack.c.h.b16 %v489
        %v786 = vunpack.c.l.b16 %v490
        %v787 = vunpack.c.h.b16 %v490
        %v788 = vunpack.c.l.b16 %v491
        %v789 = vunpack.c.h.b16 %v491
        %v790 = vunpack.c.l.b16 %v492
        %v791 = vunpack.c.h.b16 %v492
        %v792 = vunpack.c.l.b16 %v493
        %v793 = vunpack.c.h.b16 %v493
        %v794 = vunpack.c.l.b16 %v494
        %v795 = vunpack.c.h.b16 %v494
        %v796 = vunpack.c.l.b16 %v495
        %v797 = vunpack.c.h.b16 %v495
        %v798 = vunpack.c.l.b16 %v496
        %v799 = vunpack.c.h.b16 %v496
        %v800 = vunpack.c.l.b16 %v497
        %v801 = vunpack.c.h.b16 %v497
        %v802 = vunpack.c.l.b16 %v498
        %v803 = vunpack.c.h.b16 %v498
        %v804 = vunpack.c.l.b16 %v499
        %v805 = vunpack.c.h.b16 %v499
        %v806 = vunpack.c.l.b16 %v500
        %v807 = vunpack.c.h.b16 %v500
        %v808 = vunpack.c.l.b16 %v501
        %v809 = vunpack.c.h.b16 %v501
        %v810 = vunpack.c.l.b16 %v502
        %v811 = vunpack.c.h.b16 %v502
        %v812 = vunpack.c.l.b16 %v503
        %v813 = vunpack.c.h.b16 %v503
        %v814 = vunpack.c.l.b16 %v504
        %v815 = vunpack.c.h.b16 %v504
        %v816 = vunpack.c.l.b16 %v505
        %v817 = vunpack.c.h.b16 %v505
        %v818 = vunpack.c.l.b16 %v506
        %v819 = vunpack.c.h.b16 %v506
        %v820 = vunpack.c.l.b16 %v507
        %v821 = vunpack.c.h.b16 %v507
        %v822 = vunpack.c.l.b16 %v508
        %v823 = vunpack.c.h.b16 %v508
        %v824 = vpack.c.b16 %v638, %v632
        %v825 = vpack.c.b16 %v639, %v633
        %v826 = vpack.c.b16 %v640, %v634
        %v827 = vpack.c.b16 %v641, %v635
        %v828 = vpack.c.b16 %v642, %v636
        %v829 = vpack.c.b16 %v643, %v637
        %v830 = vpack.c.b16 %v650, %v644
        %v831 = vpack.c.b16 %v651, %v645
        %v832 = vpack.c.b16 %v652, %v646
        %v833 = vpack.c.b16 %v653, %v647
        %v834 = vpack.c.b16 %v654, %v648
        %v835 = vpack.c.b16 %v655, %v649
        %v836 = vpack.c.b16 %v662, %v656
        %v837 = vpack.c.b16 %v663, %v657
        %v838 = vpack.c.b16 %v664, %v658
        %v839 = vpack.c.b16 %v665, %v659
        %v840 = vpack.c.b16 %v666, %v660
        %v841 = vpack.c.b16 %v667, %v661
        %v842 = vpack.c.b16 %v674, %v668
        %v843 = vpack.c.b16 %v675, %v669
        %v844 = vpack.c.b16 %v676, %v670
        %v845 = vpack.c.b16 %v677, %v671
        %v846 = vpack.c.b16 %v678, %v672
        %v847 = vpack.c.b16 %v679, %v673
        %v848 = vpack.c.b16 %v686, %v680
        %v849 = vpack.c.b16 %v687, %v681
        %v850 = vpack.c.b16 %v688, %v682
        %v851 = vpack.c.b16 %v689, %v683
        %v852 = vpack.c.b16 %v690, %v684
        %v853 = vpack.c.b16 %v691, %v685
        %v854 = vpack.c.b16 %v698, %v692
        %v855 = vpack.c.b16 %v699, %v693
        %v856 = vpack.c.b16 %v700, %v694
        %v857 = vpack.c.b16 %v701, %v695
        %v858 = vpack.c.b16 %v702, %v696
        %v859 = vpack.c.b16 %v703, %v697
        %v860 = vpack.c.b16 %v710, %v704
        %v861 = vpack.c.b16 %v711, %v705
        %v862 = vpack.c.b16 %v712, %v706
        %v863 = vpack.c.b16 %v713, %v707
        %v864 = vpack.c.b16 %v714, %v708
        %v865 = vpack.c.b16 %v715, %v709
        %v866 = vpack.c.b16 %v722, %v716
        %v867 = vpack.c.b16 %v723, %v717
        %v868 = vpack.c.b16 %v724, %v718
        %v869 = vpack.c.b16 %v725, %v719
        %v870 = vpack.c.b16 %v726, %v720
        %v871 = vpack.c.b16 %v727, %v721
        %v872 = vpack.c.b16 %v734, %v728
        %v873 = vpack.c.b16 %v735, %v729
        %v874 = vpack.c.b16 %v736, %v730
        %v875 = vpack.c.b16 %v737, %v731
        %v876 = vpack.c.b16 %v738, %v732
        %v877 = vpack.c.b16 %v739, %v733
        %v878 = vpack.c.b16 %v746, %v740
        %v879 = vpack.c.b16 %v747, %v741
        %v880 = vpack.c.b16 %v748, %v742
        %v881 = vpack.c.b16 %v749, %v743
        %v882 = vpack.c.b16 %v750, %v744
        %v883 = vpack.c.b16 %v751, %v745
        %v884 = vpack.c.b16 %v758, %v752
        %v885 = vpack.c.b16 %v759, %v753
        %v886 = vpack.c.b16 %v760, %v754
        %v887 = vpack.c.b16 %v761, %v755
        %v888 = vpack.c.b16 %v762, %v756
        %v889 = vpack.c.b16 %v763, %v757
        %v890 = vpack.c.b16 %v770, %v764
        %v891 = vpack.c.b16 %v771, %v765
        %v892 = vpack.c.b16 %v772, %v766
        %v893 = vpack.c.b16 %v773, %v767
        %v894 = vpack.c.b16 %v774, %v768
        %v895 = vpack.c.b16 %v775, %v769
        %v896 = vpack.c.b16 %v782, %v776
        %v897 = vpack.c.b16 %v783, %v777
        %v898 = vpack.c.b16 %v784, %v778
        %v899 = vpack.c.b16 %v785, %v779
        %v900 = vpack.c.b16 %v786, %v780
        %v901 = vpack.c.b16 %v787, %v781
        %v902 = vpack.c.b16 %v794, %v788
        %v903 = vpack.c.b16 %v795, %v789
        %v904 = vpack.c.b16 %v796, %v790
        %v905 = vpack.c.b16 %v797, %v791
        %v906 = vpack.c.b16 %v798, %v792
        %v907 = vpack.c.b16 %v799, %v793
        %v908 = vpack.c.b16 %v806, %v800
        %v909 = vpack.c.b16 %v807, %v801
        %v910 = vpack.c.b16 %v808, %v802
        %v911 = vpack.c.b16 %v809, %v803
        %v912 = vpack.c.b16 %v810, %v804
        %v913 = vpack.c.b16 %v811, %v805
        %v914 = vpack.c.b16 %v818, %v812
        %v915 = vpack.c.b16 %v819, %v813
        %v916 = vpack.c.b16 %v820, %v814
        %v917 = vpack.c.b16 %v821, %v815
        %v918 = vpack.c.b16 %v822, %v816
        %v919 = vpack.c.b16 %v823, %v817
        %1016 = vmatprep.subr.bf16.mxu0 %v825
        %1017 = vmatpush1.bf16.msra.mxu0 %v824
        %1018 = vmatprep.subr.bf16.mxu0 %v831
        %1019 = vmatpush1.bf16.msra.mxu0 %v830
        %1020 = vmatprep.subr.bf16.mxu0 %v837
        %1021 = vmatpush1.bf16.msra.mxu0 %v836
        %1022 = vmatprep.subr.bf16.mxu0 %v843
        %1023 = vmatpush1.bf16.msra.mxu0 %v842
        %1024 = vmatprep.subr.bf16.mxu0 %v849
        %1025 = vmatpush1.bf16.msra.mxu0 %v848
        %1026 = vmatprep.subr.bf16.mxu0 %v855
        %1027 = vmatpush1.bf16.msra.mxu0 %v854
        %1028 = vmatprep.subr.bf16.mxu0 %v861
        %1029 = vmatpush1.bf16.msra.mxu0 %v860
        %1030 = vmatprep.subr.bf16.mxu0 %v867
        %1031 = vmatpush1.bf16.msra.mxu0 %v866
        %1032 = vmatprep.subr.bf16.mxu0 %v873
        %1033 = vmatpush1.bf16.msra.mxu0 %v872
        %1034 = vmatprep.subr.bf16.mxu0 %v879
        %1035 = vmatpush1.bf16.msra.mxu0 %v878
        %1036 = vmatprep.subr.bf16.mxu0 %v885
        %1037 = vmatpush1.bf16.msra.mxu0 %v884
        %1038 = vmatprep.subr.bf16.mxu0 %v891
        %1039 = vmatpush1.bf16.msra.mxu0 %v890
        %1040 = vmatprep.subr.bf16.mxu0 %v897
        %1041 = vmatpush1.bf16.msra.mxu0 %v896
        %1042 = vmatprep.subr.bf16.mxu0 %v903
        %1043 = vmatpush1.bf16.msra.mxu0 %v902
        %1044 = vmatprep.subr.bf16.mxu0 %v909
        %1045 = vmatpush1.bf16.msra.mxu0 %v908
        %1046 = vmatprep.subr.bf16.mxu0 %v915
        %1047 = vmatpush1.bf16.msra.mxu0 %v914
        %1048 = vmatprep.mubr.bf16.mxu0 %v533
        %1049 = vmatmul.mubr.bf16.gmra.mrb[0].mxu0 %v521
        %v1050 = vpop.f32.mrb[0].mxu0
        %v1051 = vadd.f32 0.0, %v1050
        %v1052 = vpop.f32.mrb[0].mxu0
        %v1053 = vadd.f32 0.0, %v1052
        %v1054 = vpop.f32.mrb[0].mxu0
        %v1055 = vadd.f32 0.0, %v1054
        %v1056 = vpop.f32.mrb[0].mxu0
        %v1057 = vadd.f32 0.0, %v1056
        %1058 = vdwg.mxu0
        %1059 = vmatprep.subr.bf16.mxu0 %v827
        %1060 = vmatpush1.bf16.msra.mxu0 %v826
        %1061 = vmatprep.subr.bf16.mxu0 %v833
        %1062 = vmatpush1.bf16.msra.mxu0 %v832
        %1063 = vmatprep.subr.bf16.mxu0 %v839
        %1064 = vmatpush1.bf16.msra.mxu0 %v838
        %1065 = vmatprep.subr.bf16.mxu0 %v845
        %1066 = vmatpush1.bf16.msra.mxu0 %v844
        %1067 = vmatprep.subr.bf16.mxu0 %v851
        %1068 = vmatpush1.bf16.msra.mxu0 %v850
        %1069 = vmatprep.subr.bf16.mxu0 %v857
        %1070 = vmatpush1.bf16.msra.mxu0 %v856
        %1071 = vmatprep.subr.bf16.mxu0 %v863
        %1072 = vmatpush1.bf16.msra.mxu0 %v862
        %1073 = vmatprep.subr.bf16.mxu0 %v869
        %1074 = vmatpush1.bf16.msra.mxu0 %v868
        %1075 = vmatprep.subr.bf16.mxu0 %v875
        %1076 = vmatpush1.bf16.msra.mxu0 %v874
        %1077 = vmatprep.subr.bf16.mxu0 %v881
        %1078 = vmatpush1.bf16.msra.mxu0 %v880
        %1079 = vmatprep.subr.bf16.mxu0 %v887
        %1080 = vmatpush1.bf16.msra.mxu0 %v886
        %1081 = vmatprep.subr.bf16.mxu0 %v893
        %1082 = vmatpush1.bf16.msra.mxu0 %v892
        %1083 = vmatprep.subr.bf16.mxu0 %v899
        %1084 = vmatpush1.bf16.msra.mxu0 %v898
        %1085 = vmatprep.subr.bf16.mxu0 %v905
        %1086 = vmatpush1.bf16.msra.mxu0 %v904
        %1087 = vmatprep.subr.bf16.mxu0 %v911
        %1088 = vmatpush1.bf16.msra.mxu0 %v910
        %1089 = vmatprep.subr.bf16.mxu0 %v917
        %1090 = vmatpush1.bf16.msra.mxu0 %v916
        %1091 = vmatprep.mubr.bf16.mxu0 %v533
        %1092 = vmatmul.mubr.bf16.gmra.mrb[0].mxu0 %v521
        %v1093 = vpop.f32.mrb[0].mxu0
        %v1094 = vadd.f32 0.0, %v1093
        %v1095 = vpop.f32.mrb[0].mxu0
        %v1096 = vadd.f32 0.0, %v1095
        %v1097 = vpop.f32.mrb[0].mxu0
        %v1098 = vadd.f32 0.0, %v1097
        %v1099 = vpop.f32.mrb[0].mxu0
        %v1100 = vadd.f32 0.0, %v1099
        %1101 = vdwg.mxu0
        %1102 = vmatprep.subr.bf16.mxu0 %v829
        %1103 = vmatpush1.bf16.msra.mxu0 %v828
        %1104 = vmatprep.subr.bf16.mxu0 %v835
        %1105 = vmatpush1.bf16.msra.mxu0 %v834
        %1106 = vmatprep.subr.bf16.mxu0 %v841
        %1107 = vmatpush1.bf16.msra.mxu0 %v840
        %1108 = vmatprep.subr.bf16.mxu0 %v847
        %1109 = vmatpush1.bf16.msra.mxu0 %v846
        %1110 = vmatprep.subr.bf16.mxu0 %v853
        %1111 = vmatpush1.bf16.msra.mxu0 %v852
        %1112 = vmatprep.subr.bf16.mxu0 %v859
        %1113 = vmatpush1.bf16.msra.mxu0 %v858
        %1114 = vmatprep.subr.bf16.mxu0 %v865
        %1115 = vmatpush1.bf16.msra.mxu0 %v864
        %1116 = vmatprep.subr.bf16.mxu0 %v871
        %1117 = vmatpush1.bf16.msra.mxu0 %v870
        %1118 = vmatprep.subr.bf16.mxu0 %v877
        %1119 = vmatpush1.bf16.msra.mxu0 %v876
        %1120 = vmatprep.subr.bf16.mxu0 %v883
        %1121 = vmatpush1.bf16.msra.mxu0 %v882
        %1122 = vmatprep.subr.bf16.mxu0 %v889
        %1123 = vmatpush1.bf16.msra.mxu0 %v888
        %1124 = vmatprep.subr.bf16.mxu0 %v895
        %1125 = vmatpush1.bf16.msra.mxu0 %v894
        %1126 = vmatprep.subr.bf16.mxu0 %v901
        %1127 = vmatpush1.bf16.msra.mxu0 %v900
        %1128 = vmatprep.subr.bf16.mxu0 %v907
        %1129 = vmatpush1.bf16.msra.mxu0 %v906
        %1130 = vmatprep.subr.bf16.mxu0 %v913
        %1131 = vmatpush1.bf16.msra.mxu0 %v912
        %1132 = vmatprep.subr.bf16.mxu0 %v919
        %1133 = vmatpush1.bf16.msra.mxu0 %v918
        %1134 = vmatprep.mubr.bf16.mxu0 %v533
        %1135 = vmatmul.mubr.bf16.gmra.mrb[0].mxu0 %v521
        %v1136 = vpop.f32.mrb[0].mxu0
        %v1137 = vadd.f32 0.0, %v1136
        %v1138 = vpop.f32.mrb[0].mxu0
        %v1139 = vadd.f32 0.0, %v1138
        %v1140 = vpop.f32.mrb[0].mxu0
        %v1141 = vadd.f32 0.0, %v1140
        %v1142 = vpop.f32.mrb[0].mxu0
        %v1143 = vadd.f32 0.0, %v1142
        %1144 = vdwg.mxu0
        %v1241 = vunpack.c.l.b16 %v315
        %v1242 = vunpack.c.h.b16 %v315
        %v1243 = vunpack.c.l.b16 %v316
        %v1244 = vunpack.c.h.b16 %v316
        %v1245 = vunpack.c.l.b16 %v317
        %v1246 = vunpack.c.h.b16 %v317
        %v1247 = vunpack.c.l.b16 %v318
        %v1248 = vunpack.c.h.b16 %v318
        %v1249 = vunpack.c.l.b16 %v319
        %v1250 = vunpack.c.h.b16 %v319
        %v1251 = vunpack.c.l.b16 %v320
        %v1252 = vunpack.c.h.b16 %v320
        %v1253 = vunpack.c.l.b16 %v321
        %v1254 = vunpack.c.h.b16 %v321
        %v1255 = vunpack.c.l.b16 %v322
        %v1256 = vunpack.c.h.b16 %v322
        %v1257 = vunpack.c.l.b16 %v323
        %v1258 = vunpack.c.h.b16 %v323
        %v1259 = vunpack.c.l.b16 %v324
        %v1260 = vunpack.c.h.b16 %v324
        %v1261 = vunpack.c.l.b16 %v325
        %v1262 = vunpack.c.h.b16 %v325
        %v1263 = vunpack.c.l.b16 %v326
        %v1264 = vunpack.c.h.b16 %v326
        %v1265 = vunpack.c.l.b16 %v327
        %v1266 = vunpack.c.h.b16 %v327
        %v1267 = vunpack.c.l.b16 %v328
        %v1268 = vunpack.c.h.b16 %v328
        %v1269 = vunpack.c.l.b16 %v329
        %v1270 = vunpack.c.h.b16 %v329
        %v1271 = vunpack.c.l.b16 %v330
        %v1272 = vunpack.c.h.b16 %v330
        %v1273 = vunpack.c.l.b16 %v331
        %v1274 = vunpack.c.h.b16 %v331
        %v1275 = vunpack.c.l.b16 %v332
        %v1276 = vunpack.c.h.b16 %v332
        %v1277 = vunpack.c.l.b16 %v333
        %v1278 = vunpack.c.h.b16 %v333
        %v1279 = vunpack.c.l.b16 %v334
        %v1280 = vunpack.c.h.b16 %v334
        %v1281 = vunpack.c.l.b16 %v335
        %v1282 = vunpack.c.h.b16 %v335
        %v1283 = vunpack.c.l.b16 %v336
        %v1284 = vunpack.c.h.b16 %v336
        %v1285 = vunpack.c.l.b16 %v337
        %v1286 = vunpack.c.h.b16 %v337
        %v1287 = vunpack.c.l.b16 %v338
        %v1288 = vunpack.c.h.b16 %v338
        %v1289 = vunpack.c.l.b16 %v339
        %v1290 = vunpack.c.h.b16 %v339
        %v1291 = vunpack.c.l.b16 %v340
        %v1292 = vunpack.c.h.b16 %v340
        %v1293 = vunpack.c.l.b16 %v341
        %v1294 = vunpack.c.h.b16 %v341
        %v1295 = vunpack.c.l.b16 %v342
        %v1296 = vunpack.c.h.b16 %v342
        %v1297 = vunpack.c.l.b16 %v343
        %v1298 = vunpack.c.h.b16 %v343
        %v1299 = vunpack.c.l.b16 %v344
        %v1300 = vunpack.c.h.b16 %v344
        %v1301 = vunpack.c.l.b16 %v345
        %v1302 = vunpack.c.h.b16 %v345
        %v1303 = vunpack.c.l.b16 %v346
        %v1304 = vunpack.c.h.b16 %v346
        %v1305 = vunpack.c.l.b16 %v347
        %v1306 = vunpack.c.h.b16 %v347
        %v1307 = vunpack.c.l.b16 %v348
        %v1308 = vunpack.c.h.b16 %v348
        %v1309 = vunpack.c.l.b16 %v349
        %v1310 = vunpack.c.h.b16 %v349
        %v1311 = vunpack.c.l.b16 %v350
        %v1312 = vunpack.c.h.b16 %v350
        %v1313 = vunpack.c.l.b16 %v351
        %v1314 = vunpack.c.h.b16 %v351
        %v1315 = vunpack.c.l.b16 %v352
        %v1316 = vunpack.c.h.b16 %v352
        %v1317 = vunpack.c.l.b16 %v353
        %v1318 = vunpack.c.h.b16 %v353
        %v1319 = vunpack.c.l.b16 %v354
        %v1320 = vunpack.c.h.b16 %v354
        %v1321 = vunpack.c.l.b16 %v355
        %v1322 = vunpack.c.h.b16 %v355
        %v1323 = vunpack.c.l.b16 %v356
        %v1324 = vunpack.c.h.b16 %v356
        %v1325 = vunpack.c.l.b16 %v357
        %v1326 = vunpack.c.h.b16 %v357
        %v1327 = vunpack.c.l.b16 %v358
        %v1328 = vunpack.c.h.b16 %v358
        %v1329 = vunpack.c.l.b16 %v359
        %v1330 = vunpack.c.h.b16 %v359
        %v1331 = vunpack.c.l.b16 %v360
        %v1332 = vunpack.c.h.b16 %v360
        %v1333 = vunpack.c.l.b16 %v361
        %v1334 = vunpack.c.h.b16 %v361
        %v1335 = vunpack.c.l.b16 %v362
        %v1336 = vunpack.c.h.b16 %v362
        %v1337 = vunpack.c.l.b16 %v363
        %v1338 = vunpack.c.h.b16 %v363
        %v1339 = vunpack.c.l.b16 %v364
        %v1340 = vunpack.c.h.b16 %v364
        %v1341 = vunpack.c.l.b16 %v365
        %v1342 = vunpack.c.h.b16 %v365
        %v1343 = vunpack.c.l.b16 %v366
        %v1344 = vunpack.c.h.b16 %v366
        %v1345 = vunpack.c.l.b16 %v367
        %v1346 = vunpack.c.h.b16 %v367
        %v1347 = vunpack.c.l.b16 %v368
        %v1348 = vunpack.c.h.b16 %v368
        %v1349 = vunpack.c.l.b16 %v369
        %v1350 = vunpack.c.h.b16 %v369
        %v1351 = vunpack.c.l.b16 %v370
        %v1352 = vunpack.c.h.b16 %v370
        %v1353 = vunpack.c.l.b16 %v371
        %v1354 = vunpack.c.h.b16 %v371
        %v1355 = vunpack.c.l.b16 %v372
        %v1356 = vunpack.c.h.b16 %v372
        %v1357 = vunpack.c.l.b16 %v373
        %v1358 = vunpack.c.h.b16 %v373
        %v1359 = vunpack.c.l.b16 %v374
        %v1360 = vunpack.c.h.b16 %v374
        %v1361 = vunpack.c.l.b16 %v375
        %v1362 = vunpack.c.h.b16 %v375
        %v1363 = vunpack.c.l.b16 %v376
        %v1364 = vunpack.c.h.b16 %v376
        %v1365 = vunpack.c.l.b16 %v377
        %v1366 = vunpack.c.h.b16 %v377
        %v1367 = vunpack.c.l.b16 %v378
        %v1368 = vunpack.c.h.b16 %v378
        %v1369 = vunpack.c.l.b16 %v379
        %v1370 = vunpack.c.h.b16 %v379
        %v1371 = vunpack.c.l.b16 %v380
        %v1372 = vunpack.c.h.b16 %v380
        %v1373 = vunpack.c.l.b16 %v381
        %v1374 = vunpack.c.h.b16 %v381
        %v1375 = vunpack.c.l.b16 %v382
        %v1376 = vunpack.c.h.b16 %v382
        %v1377 = vunpack.c.l.b16 %v383
        %v1378 = vunpack.c.h.b16 %v383
        %v1379 = vunpack.c.l.b16 %v384
        %v1380 = vunpack.c.h.b16 %v384
        %v1381 = vunpack.c.l.b16 %v385
        %v1382 = vunpack.c.h.b16 %v385
        %v1383 = vunpack.c.l.b16 %v386
        %v1384 = vunpack.c.h.b16 %v386
        %v1385 = vunpack.c.l.b16 %v387
        %v1386 = vunpack.c.h.b16 %v387
        %v1387 = vunpack.c.l.b16 %v388
        %v1388 = vunpack.c.h.b16 %v388
        %v1389 = vunpack.c.l.b16 %v389
        %v1390 = vunpack.c.h.b16 %v389
        %v1391 = vunpack.c.l.b16 %v390
        %v1392 = vunpack.c.h.b16 %v390
        %v1393 = vunpack.c.l.b16 %v391
        %v1394 = vunpack.c.h.b16 %v391
        %v1395 = vunpack.c.l.b16 %v392
        %v1396 = vunpack.c.h.b16 %v392
        %v1397 = vunpack.c.l.b16 %v393
        %v1398 = vunpack.c.h.b16 %v393
        %v1399 = vunpack.c.l.b16 %v394
        %v1400 = vunpack.c.h.b16 %v394
        %v1401 = vunpack.c.l.b16 %v395
        %v1402 = vunpack.c.h.b16 %v395
        %v1403 = vunpack.c.l.b16 %v396
        %v1404 = vunpack.c.h.b16 %v396
        %v1405 = vunpack.c.l.b16 %v397
        %v1406 = vunpack.c.h.b16 %v397
        %v1407 = vunpack.c.l.b16 %v398
        %v1408 = vunpack.c.h.b16 %v398
        %v1409 = vunpack.c.l.b16 %v399
        %v1410 = vunpack.c.h.b16 %v399
        %v1411 = vunpack.c.l.b16 %v400
        %v1412 = vunpack.c.h.b16 %v400
        %v1413 = vunpack.c.l.b16 %v401
        %v1414 = vunpack.c.h.b16 %v401
        %v1415 = vunpack.c.l.b16 %v402
        %v1416 = vunpack.c.h.b16 %v402
        %v1417 = vunpack.c.l.b16 %v403
        %v1418 = vunpack.c.h.b16 %v403
        %v1419 = vunpack.c.l.b16 %v404
        %v1420 = vunpack.c.h.b16 %v404
        %v1421 = vunpack.c.l.b16 %v405
        %v1422 = vunpack.c.h.b16 %v405
        %v1423 = vunpack.c.l.b16 %v406
        %v1424 = vunpack.c.h.b16 %v406
        %v1425 = vunpack.c.l.b16 %v407
        %v1426 = vunpack.c.h.b16 %v407
        %v1427 = vunpack.c.l.b16 %v408
        %v1428 = vunpack.c.h.b16 %v408
        %v1429 = vunpack.c.l.b16 %v409
        %v1430 = vunpack.c.h.b16 %v409
        %v1431 = vunpack.c.l.b16 %v410
        %v1432 = vunpack.c.h.b16 %v410
        %v1433 = vpack.c.b16 %v1247, %v1241
        %v1434 = vpack.c.b16 %v1248, %v1242
        %v1435 = vpack.c.b16 %v1249, %v1243
        %v1436 = vpack.c.b16 %v1250, %v1244
        %v1437 = vpack.c.b16 %v1251, %v1245
        %v1438 = vpack.c.b16 %v1252, %v1246
        %v1439 = vpack.c.b16 %v1259, %v1253
        %v1440 = vpack.c.b16 %v1260, %v1254
        %v1441 = vpack.c.b16 %v1261, %v1255
        %v1442 = vpack.c.b16 %v1262, %v1256
        %v1443 = vpack.c.b16 %v1263, %v1257
        %v1444 = vpack.c.b16 %v1264, %v1258
        %v1445 = vpack.c.b16 %v1271, %v1265
        %v1446 = vpack.c.b16 %v1272, %v1266
        %v1447 = vpack.c.b16 %v1273, %v1267
        %v1448 = vpack.c.b16 %v1274, %v1268
        %v1449 = vpack.c.b16 %v1275, %v1269
        %v1450 = vpack.c.b16 %v1276, %v1270
        %v1451 = vpack.c.b16 %v1283, %v1277
        %v1452 = vpack.c.b16 %v1284, %v1278
        %v1453 = vpack.c.b16 %v1285, %v1279
        %v1454 = vpack.c.b16 %v1286, %v1280
        %v1455 = vpack.c.b16 %v1287, %v1281
        %v1456 = vpack.c.b16 %v1288, %v1282
        %v1457 = vpack.c.b16 %v1295, %v1289
        %v1458 = vpack.c.b16 %v1296, %v1290
        %v1459 = vpack.c.b16 %v1297, %v1291
        %v1460 = vpack.c.b16 %v1298, %v1292
        %v1461 = vpack.c.b16 %v1299, %v1293
        %v1462 = vpack.c.b16 %v1300, %v1294
        %v1463 = vpack.c.b16 %v1307, %v1301
        %v1464 = vpack.c.b16 %v1308, %v1302
        %v1465 = vpack.c.b16 %v1309, %v1303
        %v1466 = vpack.c.b16 %v1310, %v1304
        %v1467 = vpack.c.b16 %v1311, %v1305
        %v1468 = vpack.c.b16 %v1312, %v1306
        %v1469 = vpack.c.b16 %v1319, %v1313
        %v1470 = vpack.c.b16 %v1320, %v1314
        %v1471 = vpack.c.b16 %v1321, %v1315
        %v1472 = vpack.c.b16 %v1322, %v1316
        %v1473 = vpack.c.b16 %v1323, %v1317
        %v1474 = vpack.c.b16 %v1324, %v1318
        %v1475 = vpack.c.b16 %v1331, %v1325
        %v1476 = vpack.c.b16 %v1332, %v1326
        %v1477 = vpack.c.b16 %v1333, %v1327
        %v1478 = vpack.c.b16 %v1334, %v1328
        %v1479 = vpack.c.b16 %v1335, %v1329
        %v1480 = vpack.c.b16 %v1336, %v1330
        %v1481 = vpack.c.b16 %v1343, %v1337
        %v1482 = vpack.c.b16 %v1344, %v1338
        %v1483 = vpack.c.b16 %v1345, %v1339
        %v1484 = vpack.c.b16 %v1346, %v1340
        %v1485 = vpack.c.b16 %v1347, %v1341
        %v1486 = vpack.c.b16 %v1348, %v1342
        %v1487 = vpack.c.b16 %v1355, %v1349
        %v1488 = vpack.c.b16 %v1356, %v1350
        %v1489 = vpack.c.b16 %v1357, %v1351
        %v1490 = vpack.c.b16 %v1358, %v1352
        %v1491 = vpack.c.b16 %v1359, %v1353
        %v1492 = vpack.c.b16 %v1360, %v1354
        %v1493 = vpack.c.b16 %v1367, %v1361
        %v1494 = vpack.c.b16 %v1368, %v1362
        %v1495 = vpack.c.b16 %v1369, %v1363
        %v1496 = vpack.c.b16 %v1370, %v1364
        %v1497 = vpack.c.b16 %v1371, %v1365
        %v1498 = vpack.c.b16 %v1372, %v1366
        %v1499 = vpack.c.b16 %v1379, %v1373
        %v1500 = vpack.c.b16 %v1380, %v1374
        %v1501 = vpack.c.b16 %v1381, %v1375
        %v1502 = vpack.c.b16 %v1382, %v1376
        %v1503 = vpack.c.b16 %v1383, %v1377
        %v1504 = vpack.c.b16 %v1384, %v1378
        %v1505 = vpack.c.b16 %v1391, %v1385
        %v1506 = vpack.c.b16 %v1392, %v1386
        %v1507 = vpack.c.b16 %v1393, %v1387
        %v1508 = vpack.c.b16 %v1394, %v1388
        %v1509 = vpack.c.b16 %v1395, %v1389
        %v1510 = vpack.c.b16 %v1396, %v1390
        %v1511 = vpack.c.b16 %v1403, %v1397
        %v1512 = vpack.c.b16 %v1404, %v1398
        %v1513 = vpack.c.b16 %v1405, %v1399
        %v1514 = vpack.c.b16 %v1406, %v1400
        %v1515 = vpack.c.b16 %v1407, %v1401
        %v1516 = vpack.c.b16 %v1408, %v1402
        %v1517 = vpack.c.b16 %v1415, %v1409
        %v1518 = vpack.c.b16 %v1416, %v1410
        %v1519 = vpack.c.b16 %v1417, %v1411
        %v1520 = vpack.c.b16 %v1418, %v1412
        %v1521 = vpack.c.b16 %v1419, %v1413
        %v1522 = vpack.c.b16 %v1420, %v1414
        %v1523 = vpack.c.b16 %v1427, %v1421
        %v1524 = vpack.c.b16 %v1428, %v1422
        %v1525 = vpack.c.b16 %v1429, %v1423
        %v1526 = vpack.c.b16 %v1430, %v1424
        %v1527 = vpack.c.b16 %v1431, %v1425
        %v1528 = vpack.c.b16 %v1432, %v1426
        %1625 = vmatprep.subr.bf16.mxu0 %v1434
        %1626 = vmatpush1.bf16.msra.mxu0 %v1433
        %1627 = vmatprep.subr.bf16.mxu0 %v1440
        %1628 = vmatpush1.bf16.msra.mxu0 %v1439
        %1629 = vmatprep.subr.bf16.mxu0 %v1446
        %1630 = vmatpush1.bf16.msra.mxu0 %v1445
        %1631 = vmatprep.subr.bf16.mxu0 %v1452
        %1632 = vmatpush1.bf16.msra.mxu0 %v1451
        %1633 = vmatprep.subr.bf16.mxu0 %v1458
        %1634 = vmatpush1.bf16.msra.mxu0 %v1457
        %1635 = vmatprep.subr.bf16.mxu0 %v1464
        %1636 = vmatpush1.bf16.msra.mxu0 %v1463
        %1637 = vmatprep.subr.bf16.mxu0 %v1470
        %1638 = vmatpush1.bf16.msra.mxu0 %v1469
        %1639 = vmatprep.subr.bf16.mxu0 %v1476
        %1640 = vmatpush1.bf16.msra.mxu0 %v1475
        %1641 = vmatprep.subr.bf16.mxu0 %v1482
        %1642 = vmatpush1.bf16.msra.mxu0 %v1481
        %1643 = vmatprep.subr.bf16.mxu0 %v1488
        %1644 = vmatpush1.bf16.msra.mxu0 %v1487
        %1645 = vmatprep.subr.bf16.mxu0 %v1494
        %1646 = vmatpush1.bf16.msra.mxu0 %v1493
        %1647 = vmatprep.subr.bf16.mxu0 %v1500
        %1648 = vmatpush1.bf16.msra.mxu0 %v1499
        %1649 = vmatprep.subr.bf16.mxu0 %v1506
        %1650 = vmatpush1.bf16.msra.mxu0 %v1505
        %1651 = vmatprep.subr.bf16.mxu0 %v1512
        %1652 = vmatpush1.bf16.msra.mxu0 %v1511
        %1653 = vmatprep.subr.bf16.mxu0 %v1518
        %1654 = vmatpush1.bf16.msra.mxu0 %v1517
        %1655 = vmatprep.subr.bf16.mxu0 %v1524
        %1656 = vmatpush1.bf16.msra.mxu0 %v1523
        %1657 = vmatprep.mubr.bf16.mxu0 %v314
        %1658 = vmatmul.mubr.bf16.gmra.mrb[0].mxu0 %v313
        %v1659 = vpop.f32.mrb[0].mxu0
        %v1660 = vadd.f32 %v1051, %v1659
        %v1661 = vpop.f32.mrb[0].mxu0
        %v1662 = vadd.f32 %v1053, %v1661
        %v1663 = vpop.f32.mrb[0].mxu0
        %v1664 = vadd.f32 %v1055, %v1663
        %v1665 = vpop.f32.mrb[0].mxu0
        %v1666 = vadd.f32 %v1057, %v1665
        %1667 = vdwg.mxu0
        %1668 = vmatprep.subr.bf16.mxu0 %v1436
        %1669 = vmatpush1.bf16.msra.mxu0 %v1435
        %1670 = vmatprep.subr.bf16.mxu0 %v1442
        %1671 = vmatpush1.bf16.msra.mxu0 %v1441
        %1672 = vmatprep.subr.bf16.mxu0 %v1448
        %1673 = vmatpush1.bf16.msra.mxu0 %v1447
        %1674 = vmatprep.subr.bf16.mxu0 %v1454
        %1675 = vmatpush1.bf16.msra.mxu0 %v1453
        %1676 = vmatprep.subr.bf16.mxu0 %v1460
        %1677 = vmatpush1.bf16.msra.mxu0 %v1459
        %1678 = vmatprep.subr.bf16.mxu0 %v1466
        %1679 = vmatpush1.bf16.msra.mxu0 %v1465
        %1680 = vmatprep.subr.bf16.mxu0 %v1472
        %1681 = vmatpush1.bf16.msra.mxu0 %v1471
        %1682 = vmatprep.subr.bf16.mxu0 %v1478
        %1683 = vmatpush1.bf16.msra.mxu0 %v1477
        %1684 = vmatprep.subr.bf16.mxu0 %v1484
        %1685 = vmatpush1.bf16.msra.mxu0 %v1483
        %1686 = vmatprep.subr.bf16.mxu0 %v1490
        %1687 = vmatpush1.bf16.msra.mxu0 %v1489
        %1688 = vmatprep.subr.bf16.mxu0 %v1496
        %1689 = vmatpush1.bf16.msra.mxu0 %v1495
        %1690 = vmatprep.subr.bf16.mxu0 %v1502
        %1691 = vmatpush1.bf16.msra.mxu0 %v1501
        %1692 = vmatprep.subr.bf16.mxu0 %v1508
        %1693 = vmatpush1.bf16.msra.mxu0 %v1507
        %1694 = vmatprep.subr.bf16.mxu0 %v1514
        %1695 = vmatpush1.bf16.msra.mxu0 %v1513
        %1696 = vmatprep.subr.bf16.mxu0 %v1520
        %1697 = vmatpush1.bf16.msra.mxu0 %v1519
        %1698 = vmatprep.subr.bf16.mxu0 %v1526
        %1699 = vmatpush1.bf16.msra.mxu0 %v1525
        %1700 = vmatprep.mubr.bf16.mxu0 %v314
        %1701 = vmatmul.mubr.bf16.gmra.mrb[0].mxu0 %v313
        %v1702 = vpop.f32.mrb[0].mxu0
        %v1703 = vadd.f32 %v1094, %v1702
        %v1704 = vpop.f32.mrb[0].mxu0
        %v1705 = vadd.f32 %v1096, %v1704
        %v1706 = vpop.f32.mrb[0].mxu0
        %v1707 = vadd.f32 %v1098, %v1706
        %v1708 = vpop.f32.mrb[0].mxu0
        %v1709 = vadd.f32 %v1100, %v1708
        %1710 = vdwg.mxu0
        %1711 = vmatprep.subr.bf16.mxu0 %v1438
        %1712 = vmatpush1.bf16.msra.mxu0 %v1437
        %1713 = vmatprep.subr.bf16.mxu0 %v1444
        %1714 = vmatpush1.bf16.msra.mxu0 %v1443
        %1715 = vmatprep.subr.bf16.mxu0 %v1450
        %1716 = vmatpush1.bf16.msra.mxu0 %v1449
        %1717 = vmatprep.subr.bf16.mxu0 %v1456
        %1718 = vmatpush1.bf16.msra.mxu0 %v1455
        %1719 = vmatprep.subr.bf16.mxu0 %v1462
        %1720 = vmatpush1.bf16.msra.mxu0 %v1461
        %1721 = vmatprep.subr.bf16.mxu0 %v1468
        %1722 = vmatpush1.bf16.msra.mxu0 %v1467
        %1723 = vmatprep.subr.bf16.mxu0 %v1474
        %1724 = vmatpush1.bf16.msra.mxu0 %v1473
        %1725 = vmatprep.subr.bf16.mxu0 %v1480
        %1726 = vmatpush1.bf16.msra.mxu0 %v1479
        %1727 = vmatprep.subr.bf16.mxu0 %v1486
        %1728 = vmatpush1.bf16.msra.mxu0 %v1485
        %1729 = vmatprep.subr.bf16.mxu0 %v1492
        %1730 = vmatpush1.bf16.msra.mxu0 %v1491
        %1731 = vmatprep.subr.bf16.mxu0 %v1498
        %1732 = vmatpush1.bf16.msra.mxu0 %v1497
        %1733 = vmatprep.subr.bf16.mxu0 %v1504
        %1734 = vmatpush1.bf16.msra.mxu0 %v1503
        %1735 = vmatprep.subr.bf16.mxu0 %v1510
        %1736 = vmatpush1.bf16.msra.mxu0 %v1509
        %1737 = vmatprep.subr.bf16.mxu0 %v1516
        %1738 = vmatpush1.bf16.msra.mxu0 %v1515
        %1739 = vmatprep.subr.bf16.mxu0 %v1522
        %1740 = vmatpush1.bf16.msra.mxu0 %v1521
        %1741 = vmatprep.subr.bf16.mxu0 %v1528
        %1742 = vmatpush1.bf16.msra.mxu0 %v1527
        %1743 = vmatprep.mubr.bf16.mxu0 %v314
        %1744 = vmatmul.mubr.bf16.gmra.mrb[0].mxu0 %v313
        %v1745 = vpop.f32.mrb[0].mxu0
        %v1746 = vadd.f32 %v1137, %v1745
        %v1747 = vpop.f32.mrb[0].mxu0
        %v1748 = vadd.f32 %v1139, %v1747
        %v1749 = vpop.f32.mrb[0].mxu0
        %v1750 = vadd.f32 %v1141, %v1749
        %v1751 = vpop.f32.mrb[0].mxu0
        %v1752 = vadd.f32 %v1143, %v1751
        %1753 = vdwg.mxu0
        %v1754 = vld [vmem:[#allocation7 + $0x600] sm:$0xff]
        %v1755 = vld [vmem:[#allocation7 + $0x608] sm:$0xff]
        %v1756 = vld [vmem:[#allocation7 + $0x610] sm:$0xff]
        %v1757 = vld [vmem:[#allocation7 + $0x618] sm:$0xff]
        %v1758 = vld [vmem:[#allocation7 + $0x620] sm:$0xff]
        %v1759 = vld [vmem:[#allocation7 + $0x628] sm:$0xff]
        %v1760 = vld [vmem:[#allocation7 + $0x630] sm:$0xff]
        %v1761 = vld [vmem:[#allocation7 + $0x638] sm:$0xff]
        %v1762 = vld [vmem:[#allocation7 + $0x640] sm:$0xff]
        %v1763 = vld [vmem:[#allocation7 + $0x648] sm:$0xff]
        %v1764 = vld [vmem:[#allocation7 + $0x650] sm:$0xff]
        %v1765 = vld [vmem:[#allocation7 + $0x658] sm:$0xff]
        %v1766 = vld [vmem:[#allocation7 + $0x660] sm:$0xff]
        %v1767 = vld [vmem:[#allocation7 + $0x668] sm:$0xff]
        %v1768 = vld [vmem:[#allocation7 + $0x670] sm:$0xff]
        %v1769 = vld [vmem:[#allocation7 + $0x678] sm:$0xff]
        %v1770 = vld [vmem:[#allocation7 + $0x680] sm:$0xff]
        %v1771 = vld [vmem:[#allocation7 + $0x688] sm:$0xff]
        %v1772 = vld [vmem:[#allocation7 + $0x690] sm:$0xff]
        %v1773 = vld [vmem:[#allocation7 + $0x698] sm:$0xff]
        %v1774 = vld [vmem:[#allocation7 + $0x6a0] sm:$0xff]
        %v1775 = vld [vmem:[#allocation7 + $0x6a8] sm:$0xff]
        %v1776 = vld [vmem:[#allocation7 + $0x6b0] sm:$0xff]
        %v1777 = vld [vmem:[#allocation7 + $0x6b8] sm:$0xff]
        %v1778 = vld [vmem:[#allocation7 + $0x6c0] sm:$0xff]
        %v1779 = vld [vmem:[#allocation7 + $0x6c8] sm:$0xff]
        %v1780 = vld [vmem:[#allocation7 + $0x6d0] sm:$0xff]
        %v1781 = vld [vmem:[#allocation7 + $0x6d8] sm:$0xff]
        %v1782 = vld [vmem:[#allocation7 + $0x6e0] sm:$0xff]
        %v1783 = vld [vmem:[#allocation7 + $0x6e8] sm:$0xff]
        %v1784 = vld [vmem:[#allocation7 + $0x6f0] sm:$0xff]
        %v1785 = vld [vmem:[#allocation7 + $0x6f8] sm:$0xff]
        %v1786 = vld [vmem:[#allocation7 + $0x700] sm:$0xff]
        %v1787 = vld [vmem:[#allocation7 + $0x708] sm:$0xff]
        %v1788 = vld [vmem:[#allocation7 + $0x710] sm:$0xff]
        %v1789 = vld [vmem:[#allocation7 + $0x718] sm:$0xff]
        %v1790 = vld [vmem:[#allocation7 + $0x720] sm:$0xff]
        %v1791 = vld [vmem:[#allocation7 + $0x728] sm:$0xff]
        %v1792 = vld [vmem:[#allocation7 + $0x730] sm:$0xff]
        %v1793 = vld [vmem:[#allocation7 + $0x738] sm:$0xff]
        %v1794 = vld [vmem:[#allocation7 + $0x740] sm:$0xff]
        %v1795 = vld [vmem:[#allocation7 + $0x748] sm:$0xff]
        %v1796 = vld [vmem:[#allocation7 + $0x750] sm:$0xff]
        %v1797 = vld [vmem:[#allocation7 + $0x758] sm:$0xff]
        %v1798 = vld [vmem:[#allocation7 + $0x760] sm:$0xff]
        %v1799 = vld [vmem:[#allocation7 + $0x768] sm:$0xff]
        %v1800 = vld [vmem:[#allocation7 + $0x770] sm:$0xff]
        %v1801 = vld [vmem:[#allocation7 + $0x778] sm:$0xff]
        %v1802 = vld [vmem:[#allocation7 + $0x780] sm:$0xff]
        %v1803 = vld [vmem:[#allocation7 + $0x788] sm:$0xff]
        %v1804 = vld [vmem:[#allocation7 + $0x790] sm:$0xff]
        %v1805 = vld [vmem:[#allocation7 + $0x798] sm:$0xff]
        %v1806 = vld [vmem:[#allocation7 + $0x7a0] sm:$0xff]
        %v1807 = vld [vmem:[#allocation7 + $0x7a8] sm:$0xff]
        %v1808 = vld [vmem:[#allocation7 + $0x7b0] sm:$0xff]
        %v1809 = vld [vmem:[#allocation7 + $0x7b8] sm:$0xff]
        %v1810 = vld [vmem:[#allocation7 + $0x7c0] sm:$0xff]
        %v1811 = vld [vmem:[#allocation7 + $0x7c8] sm:$0xff]
        %v1812 = vld [vmem:[#allocation7 + $0x7d0] sm:$0xff]
        %v1813 = vld [vmem:[#allocation7 + $0x7d8] sm:$0xff]
        %v1814 = vld [vmem:[#allocation7 + $0x7e0] sm:$0xff]
        %v1815 = vld [vmem:[#allocation7 + $0x7e8] sm:$0xff]
        %v1816 = vld [vmem:[#allocation7 + $0x7f0] sm:$0xff]
        %v1817 = vld [vmem:[#allocation7 + $0x7f8] sm:$0xff]
        %v1818 = vld [vmem:[#allocation7 + $0x800] sm:$0xff]
        %v1819 = vld [vmem:[#allocation7 + $0x808] sm:$0xff]
        %v1820 = vld [vmem:[#allocation7 + $0x810] sm:$0xff]
        %v1821 = vld [vmem:[#allocation7 + $0x818] sm:$0xff]
        %v1822 = vld [vmem:[#allocation7 + $0x820] sm:$0xff]
        %v1823 = vld [vmem:[#allocation7 + $0x828] sm:$0xff]
        %v1824 = vld [vmem:[#allocation7 + $0x830] sm:$0xff]
        %v1825 = vld [vmem:[#allocation7 + $0x838] sm:$0xff]
        %v1826 = vld [vmem:[#allocation7 + $0x840] sm:$0xff]
        %v1827 = vld [vmem:[#allocation7 + $0x848] sm:$0xff]
        %v1828 = vld [vmem:[#allocation7 + $0x850] sm:$0xff]
        %v1829 = vld [vmem:[#allocation7 + $0x858] sm:$0xff]
        %v1830 = vld [vmem:[#allocation7 + $0x860] sm:$0xff]
        %v1831 = vld [vmem:[#allocation7 + $0x868] sm:$0xff]
        %v1832 = vld [vmem:[#allocation7 + $0x870] sm:$0xff]
        %v1833 = vld [vmem:[#allocation7 + $0x878] sm:$0xff]
        %v1834 = vld [vmem:[#allocation7 + $0x880] sm:$0xff]
        %v1835 = vld [vmem:[#allocation7 + $0x888] sm:$0xff]
        %v1836 = vld [vmem:[#allocation7 + $0x890] sm:$0xff]
        %v1837 = vld [vmem:[#allocation7 + $0x898] sm:$0xff]
        %v1838 = vld [vmem:[#allocation7 + $0x8a0] sm:$0xff]
        %v1839 = vld [vmem:[#allocation7 + $0x8a8] sm:$0xff]
        %v1840 = vld [vmem:[#allocation7 + $0x8b0] sm:$0xff]
        %v1841 = vld [vmem:[#allocation7 + $0x8b8] sm:$0xff]
        %v1842 = vld [vmem:[#allocation7 + $0x8c0] sm:$0xff]
        %v1843 = vld [vmem:[#allocation7 + $0x8c8] sm:$0xff]
        %v1844 = vld [vmem:[#allocation7 + $0x8d0] sm:$0xff]
        %v1845 = vld [vmem:[#allocation7 + $0x8d8] sm:$0xff]
        %v1846 = vld [vmem:[#allocation7 + $0x8e0] sm:$0xff]
        %v1847 = vld [vmem:[#allocation7 + $0x8e8] sm:$0xff]
        %v1848 = vld [vmem:[#allocation7 + $0x8f0] sm:$0xff]
        %v1849 = vld [vmem:[#allocation7 + $0x8f8] sm:$0xff]
        %vm1854 = vcmask 1046528
        %v1855 = vrot.slane %v313, 1
        %v1856 = vrot.slane %v411, 1
        %v1857 = vsel %vm1854, %v1855, %v1856
        %v1858 = vrot.slane %v314, 1
        %v1859 = vrot.slane %v412, 1
        %v1860 = vsel %vm1854, %v1858, %v1859
        %v1959 = vunpack.c.l.b16 %v1754
        %v1960 = vunpack.c.h.b16 %v1754
        %v1961 = vunpack.c.l.b16 %v1755
        %v1962 = vunpack.c.h.b16 %v1755
        %v1963 = vunpack.c.l.b16 %v1756
        %v1964 = vunpack.c.h.b16 %v1756
        %v1965 = vunpack.c.l.b16 %v1757
        %v1966 = vunpack.c.h.b16 %v1757
        %v1967 = vunpack.c.l.b16 %v1758
        %v1968 = vunpack.c.h.b16 %v1758
        %v1969 = vunpack.c.l.b16 %v1759
        %v1970 = vunpack.c.h.b16 %v1759
        %v1971 = vunpack.c.l.b16 %v1760
        %v1972 = vunpack.c.h.b16 %v1760
        %v1973 = vunpack.c.l.b16 %v1761
        %v1974 = vunpack.c.h.b16 %v1761
        %v1975 = vunpack.c.l.b16 %v1762
        %v1976 = vunpack.c.h.b16 %v1762
        %v1977 = vunpack.c.l.b16 %v1763
        %v1978 = vunpack.c.h.b16 %v1763
        %v1979 = vunpack.c.l.b16 %v1764
        %v1980 = vunpack.c.h.b16 %v1764
        %v1981 = vunpack.c.l.b16 %v1765
        %v1982 = vunpack.c.h.b16 %v1765
        %v1983 = vunpack.c.l.b16 %v1766
        %v1984 = vunpack.c.h.b16 %v1766
        %v1985 = vunpack.c.l.b16 %v1767
        %v1986 = vunpack.c.h.b16 %v1767
        %v1987 = vunpack.c.l.b16 %v1768
        %v1988 = vunpack.c.h.b16 %v1768
        %v1989 = vunpack.c.l.b16 %v1769
        %v1990 = vunpack.c.h.b16 %v1769
        %v1991 = vunpack.c.l.b16 %v1770
        %v1992 = vunpack.c.h.b16 %v1770
        %v1993 = vunpack.c.l.b16 %v1771
        %v1994 = vunpack.c.h.b16 %v1771
        %v1995 = vunpack.c.l.b16 %v1772
        %v1996 = vunpack.c.h.b16 %v1772
        %v1997 = vunpack.c.l.b16 %v1773
        %v1998 = vunpack.c.h.b16 %v1773
        %v1999 = vunpack.c.l.b16 %v1774
        %v2000 = vunpack.c.h.b16 %v1774
        %v2001 = vunpack.c.l.b16 %v1775
        %v2002 = vunpack.c.h.b16 %v1775
        %v2003 = vunpack.c.l.b16 %v1776
        %v2004 = vunpack.c.h.b16 %v1776
        %v2005 = vunpack.c.l.b16 %v1777
        %v2006 = vunpack.c.h.b16 %v1777
        %v2007 = vunpack.c.l.b16 %v1778
        %v2008 = vunpack.c.h.b16 %v1778
        %v2009 = vunpack.c.l.b16 %v1779
        %v2010 = vunpack.c.h.b16 %v1779
        %v2011 = vunpack.c.l.b16 %v1780
        %v2012 = vunpack.c.h.b16 %v1780
        %v2013 = vunpack.c.l.b16 %v1781
        %v2014 = vunpack.c.h.b16 %v1781
        %v2015 = vunpack.c.l.b16 %v1782
        %v2016 = vunpack.c.h.b16 %v1782
        %v2017 = vunpack.c.l.b16 %v1783
        %v2018 = vunpack.c.h.b16 %v1783
        %v2019 = vunpack.c.l.b16 %v1784
        %v2020 = vunpack.c.h.b16 %v1784
        %v2021 = vunpack.c.l.b16 %v1785
        %v2022 = vunpack.c.h.b16 %v1785
        %v2023 = vunpack.c.l.b16 %v1786
        %v2024 = vunpack.c.h.b16 %v1786
        %v2025 = vunpack.c.l.b16 %v1787
        %v2026 = vunpack.c.h.b16 %v1787
        %v2027 = vunpack.c.l.b16 %v1788
        %v2028 = vunpack.c.h.b16 %v1788
        %v2029 = vunpack.c.l.b16 %v1789
        %v2030 = vunpack.c.h.b16 %v1789
        %v2031 = vunpack.c.l.b16 %v1790
        %v2032 = vunpack.c.h.b16 %v1790
        %v2033 = vunpack.c.l.b16 %v1791
        %v2034 = vunpack.c.h.b16 %v1791
        %v2035 = vunpack.c.l.b16 %v1792
        %v2036 = vunpack.c.h.b16 %v1792
        %v2037 = vunpack.c.l.b16 %v1793
        %v2038 = vunpack.c.h.b16 %v1793
        %v2039 = vunpack.c.l.b16 %v1794
        %v2040 = vunpack.c.h.b16 %v1794
        %v2041 = vunpack.c.l.b16 %v1795
        %v2042 = vunpack.c.h.b16 %v1795
        %v2043 = vunpack.c.l.b16 %v1796
        %v2044 = vunpack.c.h.b16 %v1796
        %v2045 = vunpack.c.l.b16 %v1797
        %v2046 = vunpack.c.h.b16 %v1797
        %v2047 = vunpack.c.l.b16 %v1798
        %v2048 = vunpack.c.h.b16 %v1798
        %v2049 = vunpack.c.l.b16 %v1799
        %v2050 = vunpack.c.h.b16 %v1799
        %v2051 = vunpack.c.l.b16 %v1800
        %v2052 = vunpack.c.h.b16 %v1800
        %v2053 = vunpack.c.l.b16 %v1801
        %v2054 = vunpack.c.h.b16 %v1801
        %v2055 = vunpack.c.l.b16 %v1802
        %v2056 = vunpack.c.h.b16 %v1802
        %v2057 = vunpack.c.l.b16 %v1803
        %v2058 = vunpack.c.h.b16 %v1803
        %v2059 = vunpack.c.l.b16 %v1804
        %v2060 = vunpack.c.h.b16 %v1804
        %v2061 = vunpack.c.l.b16 %v1805
        %v2062 = vunpack.c.h.b16 %v1805
        %v2063 = vunpack.c.l.b16 %v1806
        %v2064 = vunpack.c.h.b16 %v1806
        %v2065 = vunpack.c.l.b16 %v1807
        %v2066 = vunpack.c.h.b16 %v1807
        %v2067 = vunpack.c.l.b16 %v1808
        %v2068 = vunpack.c.h.b16 %v1808
        %v2069 = vunpack.c.l.b16 %v1809
        %v2070 = vunpack.c.h.b16 %v1809
        %v2071 = vunpack.c.l.b16 %v1810
        %v2072 = vunpack.c.h.b16 %v1810
        %v2073 = vunpack.c.l.b16 %v1811
        %v2074 = vunpack.c.h.b16 %v1811
        %v2075 = vunpack.c.l.b16 %v1812
        %v2076 = vunpack.c.h.b16 %v1812
        %v2077 = vunpack.c.l.b16 %v1813
        %v2078 = vunpack.c.h.b16 %v1813
        %v2079 = vunpack.c.l.b16 %v1814
        %v2080 = vunpack.c.h.b16 %v1814
        %v2081 = vunpack.c.l.b16 %v1815
        %v2082 = vunpack.c.h.b16 %v1815
        %v2083 = vunpack.c.l.b16 %v1816
        %v2084 = vunpack.c.h.b16 %v1816
        %v2085 = vunpack.c.l.b16 %v1817
        %v2086 = vunpack.c.h.b16 %v1817
        %v2087 = vunpack.c.l.b16 %v1818
        %v2088 = vunpack.c.h.b16 %v1818
        %v2089 = vunpack.c.l.b16 %v1819
        %v2090 = vunpack.c.h.b16 %v1819
        %v2091 = vunpack.c.l.b16 %v1820
        %v2092 = vunpack.c.h.b16 %v1820
        %v2093 = vunpack.c.l.b16 %v1821
        %v2094 = vunpack.c.h.b16 %v1821
        %v2095 = vunpack.c.l.b16 %v1822
        %v2096 = vunpack.c.h.b16 %v1822
        %v2097 = vunpack.c.l.b16 %v1823
        %v2098 = vunpack.c.h.b16 %v1823
        %v2099 = vunpack.c.l.b16 %v1824
        %v2100 = vunpack.c.h.b16 %v1824
        %v2101 = vunpack.c.l.b16 %v1825
        %v2102 = vunpack.c.h.b16 %v1825
        %v2103 = vunpack.c.l.b16 %v1826
        %v2104 = vunpack.c.h.b16 %v1826
        %v2105 = vunpack.c.l.b16 %v1827
        %v2106 = vunpack.c.h.b16 %v1827
        %v2107 = vunpack.c.l.b16 %v1828
        %v2108 = vunpack.c.h.b16 %v1828
        %v2109 = vunpack.c.l.b16 %v1829
        %v2110 = vunpack.c.h.b16 %v1829
        %v2111 = vunpack.c.l.b16 %v1830
        %v2112 = vunpack.c.h.b16 %v1830
        %v2113 = vunpack.c.l.b16 %v1831
        %v2114 = vunpack.c.h.b16 %v1831
        %v2115 = vunpack.c.l.b16 %v1832
        %v2116 = vunpack.c.h.b16 %v1832
        %v2117 = vunpack.c.l.b16 %v1833
        %v2118 = vunpack.c.h.b16 %v1833
        %v2119 = vunpack.c.l.b16 %v1834
        %v2120 = vunpack.c.h.b16 %v1834
        %v2121 = vunpack.c.l.b16 %v1835
        %v2122 = vunpack.c.h.b16 %v1835
        %v2123 = vunpack.c.l.b16 %v1836
        %v2124 = vunpack.c.h.b16 %v1836
        %v2125 = vunpack.c.l.b16 %v1837
        %v2126 = vunpack.c.h.b16 %v1837
        %v2127 = vunpack.c.l.b16 %v1838
        %v2128 = vunpack.c.h.b16 %v1838
        %v2129 = vunpack.c.l.b16 %v1839
        %v2130 = vunpack.c.h.b16 %v1839
        %v2131 = vunpack.c.l.b16 %v1840
        %v2132 = vunpack.c.h.b16 %v1840
        %v2133 = vunpack.c.l.b16 %v1841
        %v2134 = vunpack.c.h.b16 %v1841
        %v2135 = vunpack.c.l.b16 %v1842
        %v2136 = vunpack.c.h.b16 %v1842
        %v2137 = vunpack.c.l.b16 %v1843
        %v2138 = vunpack.c.h.b16 %v1843
        %v2139 = vunpack.c.l.b16 %v1844
        %v2140 = vunpack.c.h.b16 %v1844
        %v2141 = vunpack.c.l.b16 %v1845
        %v2142 = vunpack.c.h.b16 %v1845
        %v2143 = vunpack.c.l.b16 %v1846
        %v2144 = vunpack.c.h.b16 %v1846
        %v2145 = vunpack.c.l.b16 %v1847
        %v2146 = vunpack.c.h.b16 %v1847
        %v2147 = vunpack.c.l.b16 %v1848
        %v2148 = vunpack.c.h.b16 %v1848
        %v2149 = vunpack.c.l.b16 %v1849
        %v2150 = vunpack.c.h.b16 %v1849
        %v2151 = vpack.c.b16 %v1965, %v1959
        %v2152 = vpack.c.b16 %v1966, %v1960
        %v2153 = vpack.c.b16 %v1967, %v1961
        %v2154 = vpack.c.b16 %v1968, %v1962
        %v2155 = vpack.c.b16 %v1969, %v1963
        %v2156 = vpack.c.b16 %v1970, %v1964
        %v2157 = vpack.c.b16 %v1977, %v1971
        %v2158 = vpack.c.b16 %v1978, %v1972
        %v2159 = vpack.c.b16 %v1979, %v1973
        %v2160 = vpack.c.b16 %v1980, %v1974
        %v2161 = vpack.c.b16 %v1981, %v1975
        %v2162 = vpack.c.b16 %v1982, %v1976
        %v2163 = vpack.c.b16 %v1989, %v1983
        %v2164 = vpack.c.b16 %v1990, %v1984
        %v2165 = vpack.c.b16 %v1991, %v1985
        %v2166 = vpack.c.b16 %v1992, %v1986
        %v2167 = vpack.c.b16 %v1993, %v1987
        %v2168 = vpack.c.b16 %v1994, %v1988
        %v2169 = vpack.c.b16 %v2001, %v1995
        %v2170 = vpack.c.b16 %v2002, %v1996
        %v2171 = vpack.c.b16 %v2003, %v1997
        %v2172 = vpack.c.b16 %v2004, %v1998
        %v2173 = vpack.c.b16 %v2005, %v1999
        %v2174 = vpack.c.b16 %v2006, %v2000
        %v2175 = vpack.c.b16 %v2013, %v2007
        %v2176 = vpack.c.b16 %v2014, %v2008
        %v2177 = vpack.c.b16 %v2015, %v2009
        %v2178 = vpack.c.b16 %v2016, %v2010
        %v2179 = vpack.c.b16 %v2017, %v2011
        %v2180 = vpack.c.b16 %v2018, %v2012
        %v2181 = vpack.c.b16 %v2025, %v2019
        %v2182 = vpack.c.b16 %v2026, %v2020
        %v2183 = vpack.c.b16 %v2027, %v2021
        %v2184 = vpack.c.b16 %v2028, %v2022
        %v2185 = vpack.c.b16 %v2029, %v2023
        %v2186 = vpack.c.b16 %v2030, %v2024
        %v2187 = vpack.c.b16 %v2037, %v2031
        %v2188 = vpack.c.b16 %v2038, %v2032
        %v2189 = vpack.c.b16 %v2039, %v2033
        %v2190 = vpack.c.b16 %v2040, %v2034
        %v2191 = vpack.c.b16 %v2041, %v2035
        %v2192 = vpack.c.b16 %v2042, %v2036
        %v2193 = vpack.c.b16 %v2049, %v2043
        %v2194 = vpack.c.b16 %v2050, %v2044
        %v2195 = vpack.c.b16 %v2051, %v2045
        %v2196 = vpack.c.b16 %v2052, %v2046
        %v2197 = vpack.c.b16 %v2053, %v2047
        %v2198 = vpack.c.b16 %v2054, %v2048
        %v2199 = vpack.c.b16 %v2061, %v2055
        %v2200 = vpack.c.b16 %v2062, %v2056
        %v2201 = vpack.c.b16 %v2063, %v2057
        %v2202 = vpack.c.b16 %v2064, %v2058
        %v2203 = vpack.c.b16 %v2065, %v2059
        %v2204 = vpack.c.b16 %v2066, %v2060
        %v2205 = vpack.c.b16 %v2073, %v2067
        %v2206 = vpack.c.b16 %v2074, %v2068
        %v2207 = vpack.c.b16 %v2075, %v2069
        %v2208 = vpack.c.b16 %v2076, %v2070
        %v2209 = vpack.c.b16 %v2077, %v2071
        %v2210 = vpack.c.b16 %v2078, %v2072
        %v2211 = vpack.c.b16 %v2085, %v2079
        %v2212 = vpack.c.b16 %v2086, %v2080
        %v2213 = vpack.c.b16 %v2087, %v2081
        %v2214 = vpack.c.b16 %v2088, %v2082
        %v2215 = vpack.c.b16 %v2089, %v2083
        %v2216 = vpack.c.b16 %v2090, %v2084
        %v2217 = vpack.c.b16 %v2097, %v2091
        %v2218 = vpack.c.b16 %v2098, %v2092
        %v2219 = vpack.c.b16 %v2099, %v2093
        %v2220 = vpack.c.b16 %v2100, %v2094
        %v2221 = vpack.c.b16 %v2101, %v2095
        %v2222 = vpack.c.b16 %v2102, %v2096
        %v2223 = vpack.c.b16 %v2109, %v2103
        %v2224 = vpack.c.b16 %v2110, %v2104
        %v2225 = vpack.c.b16 %v2111, %v2105
        %v2226 = vpack.c.b16 %v2112, %v2106
        %v2227 = vpack.c.b16 %v2113, %v2107
        %v2228 = vpack.c.b16 %v2114, %v2108
        %v2229 = vpack.c.b16 %v2121, %v2115
        %v2230 = vpack.c.b16 %v2122, %v2116
        %v2231 = vpack.c.b16 %v2123, %v2117
        %v2232 = vpack.c.b16 %v2124, %v2118
        %v2233 = vpack.c.b16 %v2125, %v2119
        %v2234 = vpack.c.b16 %v2126, %v2120
        %v2235 = vpack.c.b16 %v2133, %v2127
        %v2236 = vpack.c.b16 %v2134, %v2128
        %v2237 = vpack.c.b16 %v2135, %v2129
        %v2238 = vpack.c.b16 %v2136, %v2130
        %v2239 = vpack.c.b16 %v2137, %v2131
        %v2240 = vpack.c.b16 %v2138, %v2132
        %v2241 = vpack.c.b16 %v2145, %v2139
        %v2242 = vpack.c.b16 %v2146, %v2140
        %v2243 = vpack.c.b16 %v2147, %v2141
        %v2244 = vpack.c.b16 %v2148, %v2142
        %v2245 = vpack.c.b16 %v2149, %v2143
        %v2246 = vpack.c.b16 %v2150, %v2144
        %2343 = vmatprep.subr.bf16.mxu0 %v2152
        %2344 = vmatpush1.bf16.msra.mxu0 %v2151
        %2345 = vmatprep.subr.bf16.mxu0 %v2158
        %2346 = vmatpush1.bf16.msra.mxu0 %v2157
        %2347 = vmatprep.subr.bf16.mxu0 %v2164
        %2348 = vmatpush1.bf16.msra.mxu0 %v2163
        %2349 = vmatprep.subr.bf16.mxu0 %v2170
        %2350 = vmatpush1.bf16.msra.mxu0 %v2169
        %2351 = vmatprep.subr.bf16.mxu0 %v2176
        %2352 = vmatpush1.bf16.msra.mxu0 %v2175
        %2353 = vmatprep.subr.bf16.mxu0 %v2182
        %2354 = vmatpush1.bf16.msra.mxu0 %v2181
        %2355 = vmatprep.subr.bf16.mxu0 %v2188
        %2356 = vmatpush1.bf16.msra.mxu0 %v2187
        %2357 = vmatprep.subr.bf16.mxu0 %v2194
        %2358 = vmatpush1.bf16.msra.mxu0 %v2193
        %2359 = vmatprep.subr.bf16.mxu0 %v2200
        %2360 = vmatpush1.bf16.msra.mxu0 %v2199
        %2361 = vmatprep.subr.bf16.mxu0 %v2206
        %2362 = vmatpush1.bf16.msra.mxu0 %v2205
        %2363 = vmatprep.subr.bf16.mxu0 %v2212
        %2364 = vmatpush1.bf16.msra.mxu0 %v2211
        %2365 = vmatprep.subr.bf16.mxu0 %v2218
        %2366 = vmatpush1.bf16.msra.mxu0 %v2217
        %2367 = vmatprep.subr.bf16.mxu0 %v2224
        %2368 = vmatpush1.bf16.msra.mxu0 %v2223
        %2369 = vmatprep.subr.bf16.mxu0 %v2230
        %2370 = vmatpush1.bf16.msra.mxu0 %v2229
        %2371 = vmatprep.subr.bf16.mxu0 %v2236
        %2372 = vmatpush1.bf16.msra.mxu0 %v2235
        %2373 = vmatprep.subr.bf16.mxu0 %v2242
        %2374 = vmatpush1.bf16.msra.mxu0 %v2241
        %2375 = vmatprep.mubr.bf16.mxu0 %v1860
        %2376 = vmatmul.mubr.bf16.gmra.mrb[0].mxu0 %v1857
        %v2377 = vpop.f32.mrb[0].mxu0
        %v2378 = vadd.f32 0.0, %v2377
        %v2379 = vpop.f32.mrb[0].mxu0
        %v2380 = vadd.f32 0.0, %v2379
        %v2381 = vpop.f32.mrb[0].mxu0
        %v2382 = vadd.f32 0.0, %v2381
        %v2383 = vpop.f32.mrb[0].mxu0
        %v2384 = vadd.f32 0.0, %v2383
        %2385 = vdwg.mxu0
        %2386 = vmatprep.subr.bf16.mxu0 %v2154
        %2387 = vmatpush1.bf16.msra.mxu0 %v2153
        %2388 = vmatprep.subr.bf16.mxu0 %v2160
        %2389 = vmatpush1.bf16.msra.mxu0 %v2159
        %2390 = vmatprep.subr.bf16.mxu0 %v2166
        %2391 = vmatpush1.bf16.msra.mxu0 %v2165
        %2392 = vmatprep.subr.bf16.mxu0 %v2172
        %2393 = vmatpush1.bf16.msra.mxu0 %v2171
        %2394 = vmatprep.subr.bf16.mxu0 %v2178
        %2395 = vmatpush1.bf16.msra.mxu0 %v2177
        %2396 = vmatprep.subr.bf16.mxu0 %v2184
        %2397 = vmatpush1.bf16.msra.mxu0 %v2183
        %2398 = vmatprep.subr.bf16.mxu0 %v2190
        %2399 = vmatpush1.bf16.msra.mxu0 %v2189
        %2400 = vmatprep.subr.bf16.mxu0 %v2196
        %2401 = vmatpush1.bf16.msra.mxu0 %v2195
        %2402 = vmatprep.subr.bf16.mxu0 %v2202
        %2403 = vmatpush1.bf16.msra.mxu0 %v2201
        %2404 = vmatprep.subr.bf16.mxu0 %v2208
        %2405 = vmatpush1.bf16.msra.mxu0 %v2207
        %2406 = vmatprep.subr.bf16.mxu0 %v2214
        %2407 = vmatpush1.bf16.msra.mxu0 %v2213
        %2408 = vmatprep.subr.bf16.mxu0 %v2220
        %2409 = vmatpush1.bf16.msra.mxu0 %v2219
        %2410 = vmatprep.subr.bf16.mxu0 %v2226
        %2411 = vmatpush1.bf16.msra.mxu0 %v2225
        %2412 = vmatprep.subr.bf16.mxu0 %v2232
        %2413 = vmatpush1.bf16.msra.mxu0 %v2231
        %2414 = vmatprep.subr.bf16.mxu0 %v2238
        %2415 = vmatpush1.bf16.msra.mxu0 %v2237
        %2416 = vmatprep.subr.bf16.mxu0 %v2244
        %2417 = vmatpush1.bf16.msra.mxu0 %v2243
        %2418 = vmatprep.mubr.bf16.mxu0 %v1860
        %2419 = vmatmul.mubr.bf16.gmra.mrb[0].mxu0 %v1857
        %v2420 = vpop.f32.mrb[0].mxu0
        %v2421 = vadd.f32 0.0, %v2420
        %v2422 = vpop.f32.mrb[0].mxu0
        %v2423 = vadd.f32 0.0, %v2422
        %v2424 = vpop.f32.mrb[0].mxu0
        %v2425 = vadd.f32 0.0, %v2424
        %v2426 = vpop.f32.mrb[0].mxu0
        %v2427 = vadd.f32 0.0, %v2426
        %2428 = vdwg.mxu0
        %2429 = vmatprep.subr.bf16.mxu0 %v2156
        %2430 = vmatpush1.bf16.msra.mxu0 %v2155
        %2431 = vmatprep.subr.bf16.mxu0 %v2162
        %2432 = vmatpush1.bf16.msra.mxu0 %v2161
        %2433 = vmatprep.subr.bf16.mxu0 %v2168
        %2434 = vmatpush1.bf16.msra.mxu0 %v2167
        %2435 = vmatprep.subr.bf16.mxu0 %v2174
        %2436 = vmatpush1.bf16.msra.mxu0 %v2173
        %2437 = vmatprep.subr.bf16.mxu0 %v2180
        %2438 = vmatpush1.bf16.msra.mxu0 %v2179
        %2439 = vmatprep.subr.bf16.mxu0 %v2186
        %2440 = vmatpush1.bf16.msra.mxu0 %v2185
        %2441 = vmatprep.subr.bf16.mxu0 %v2192
        %2442 = vmatpush1.bf16.msra.mxu0 %v2191
        %2443 = vmatprep.subr.bf16.mxu0 %v2198
        %2444 = vmatpush1.bf16.msra.mxu0 %v2197
        %2445 = vmatprep.subr.bf16.mxu0 %v2204
        %2446 = vmatpush1.bf16.msra.mxu0 %v2203
        %2447 = vmatprep.subr.bf16.mxu0 %v2210
        %2448 = vmatpush1.bf16.msra.mxu0 %v2209
        %2449 = vmatprep.subr.bf16.mxu0 %v2216
        %2450 = vmatpush1.bf16.msra.mxu0 %v2215
        %2451 = vmatprep.subr.bf16.mxu0 %v2222
        %2452 = vmatpush1.bf16.msra.mxu0 %v2221
        %2453 = vmatprep.subr.bf16.mxu0 %v2228
        %2454 = vmatpush1.bf16.msra.mxu0 %v2227
        %2455 = vmatprep.subr.bf16.mxu0 %v2234
        %2456 = vmatpush1.bf16.msra.mxu0 %v2233
        %2457 = vmatprep.subr.bf16.mxu0 %v2240
        %2458 = vmatpush1.bf16.msra.mxu0 %v2239
        %2459 = vmatprep.subr.bf16.mxu0 %v2246
        %2460 = vmatpush1.bf16.msra.mxu0 %v2245
        %2461 = vmatprep.mubr.bf16.mxu0 %v1860
        %2462 = vmatmul.mubr.bf16.gmra.mrb[0].mxu0 %v1857
        %v2463 = vpop.f32.mrb[0].mxu0
        %v2464 = vadd.f32 0.0, %v2463
        %v2465 = vpop.f32.mrb[0].mxu0
        %v2466 = vadd.f32 0.0, %v2465
        %v2467 = vpop.f32.mrb[0].mxu0
        %v2468 = vadd.f32 0.0, %v2467
        %v2469 = vpop.f32.mrb[0].mxu0
        %v2470 = vadd.f32 0.0, %v2469
        %2471 = vdwg.mxu0
        %v2472 = vadd.f32 %v1660, %v2378
        %v2473 = vadd.f32 %v1662, %v2380
        %v2474 = vadd.f32 %v1703, %v2421
        %v2475 = vadd.f32 %v1705, %v2423
        %v2476 = vadd.f32 %v1746, %v2464
        %v2477 = vadd.f32 %v1748, %v2466
        %v2478 = vadd.f32 %v1664, %v2382
        %v2479 = vadd.f32 %v1666, %v2384
        %v2480 = vadd.f32 %v1707, %v2425
        %v2481 = vadd.f32 %v1709, %v2427
        %v2482 = vadd.f32 %v1750, %v2468
        %v2483 = vadd.f32 %v1752, %v2470
        %v2484 = vld [vmem:[#allocation7 + $0x900] sm:$0xff]
        %v2485 = vld [vmem:[#allocation7 + $0x908] sm:$0xff]
        %v2486 = vld [vmem:[#allocation7 + $0x910] sm:$0xff]
        %v2487 = vld [vmem:[#allocation7 + $0x918] sm:$0xff]
        %v2488 = vld [vmem:[#allocation7 + $0x920] sm:$0xff]
        %v2489 = vld [vmem:[#allocation7 + $0x928] sm:$0xff]
        %v2490 = vld [vmem:[#allocation7 + $0x930] sm:$0xff]
        %v2491 = vld [vmem:[#allocation7 + $0x938] sm:$0xff]
        %v2492 = vld [vmem:[#allocation7 + $0x940] sm:$0xff]
        %v2493 = vld [vmem:[#allocation7 + $0x948] sm:$0xff]
        %v2494 = vld [vmem:[#allocation7 + $0x950] sm:$0xff]
        %v2495 = vld [vmem:[#allocation7 + $0x958] sm:$0xff]
        %v2496 = vld [vmem:[#allocation7 + $0x960] sm:$0xff]
        %v2497 = vld [vmem:[#allocation7 + $0x968] sm:$0xff]
        %v2498 = vld [vmem:[#allocation7 + $0x970] sm:$0xff]
        %v2499 = vld [vmem:[#allocation7 + $0x978] sm:$0xff]
        %v2500 = vld [vmem:[#allocation7 + $0x980] sm:$0xff]
        %v2501 = vld [vmem:[#allocation7 + $0x988] sm:$0xff]
        %v2502 = vld [vmem:[#allocation7 + $0x990] sm:$0xff]
        %v2503 = vld [vmem:[#allocation7 + $0x998] sm:$0xff]
        %v2504 = vld [vmem:[#allocation7 + $0x9a0] sm:$0xff]
        %v2505 = vld [vmem:[#allocation7 + $0x9a8] sm:$0xff]
        %v2506 = vld [vmem:[#allocation7 + $0x9b0] sm:$0xff]
        %v2507 = vld [vmem:[#allocation7 + $0x9b8] sm:$0xff]
        %v2508 = vld [vmem:[#allocation7 + $0x9c0] sm:$0xff]
        %v2509 = vld [vmem:[#allocation7 + $0x9c8] sm:$0xff]
        %v2510 = vld [vmem:[#allocation7 + $0x9d0] sm:$0xff]
        %v2511 = vld [vmem:[#allocation7 + $0x9d8] sm:$0xff]
        %v2512 = vld [vmem:[#allocation7 + $0x9e0] sm:$0xff]
        %v2513 = vld [vmem:[#allocation7 + $0x9e8] sm:$0xff]
        %v2514 = vld [vmem:[#allocation7 + $0x9f0] sm:$0xff]
        %v2515 = vld [vmem:[#allocation7 + $0x9f8] sm:$0xff]
        %v2516 = vld [vmem:[#allocation7 + $0xa00] sm:$0xff]
        %v2517 = vld [vmem:[#allocation7 + $0xa08] sm:$0xff]
        %v2518 = vld [vmem:[#allocation7 + $0xa10] sm:$0xff]
        %v2519 = vld [vmem:[#allocation7 + $0xa18] sm:$0xff]
        %v2520 = vld [vmem:[#allocation7 + $0xa20] sm:$0xff]
        %v2521 = vld [vmem:[#allocation7 + $0xa28] sm:$0xff]
        %v2522 = vld [vmem:[#allocation7 + $0xa30] sm:$0xff]
        %v2523 = vld [vmem:[#allocation7 + $0xa38] sm:$0xff]
        %v2524 = vld [vmem:[#allocation7 + $0xa40] sm:$0xff]
        %v2525 = vld [vmem:[#allocation7 + $0xa48] sm:$0xff]
        %v2526 = vld [vmem:[#allocation7 + $0xa50] sm:$0xff]
        %v2527 = vld [vmem:[#allocation7 + $0xa58] sm:$0xff]
        %v2528 = vld [vmem:[#allocation7 + $0xa60] sm:$0xff]
        %v2529 = vld [vmem:[#allocation7 + $0xa68] sm:$0xff]
        %v2530 = vld [vmem:[#allocation7 + $0xa70] sm:$0xff]
        %v2531 = vld [vmem:[#allocation7 + $0xa78] sm:$0xff]
        %v2532 = vld [vmem:[#allocation7 + $0xa80] sm:$0xff]
        %v2533 = vld [vmem:[#allocation7 + $0xa88] sm:$0xff]
        %v2534 = vld [vmem:[#allocation7 + $0xa90] sm:$0xff]
        %v2535 = vld [vmem:[#allocation7 + $0xa98] sm:$0xff]
        %v2536 = vld [vmem:[#allocation7 + $0xaa0] sm:$0xff]
        %v2537 = vld [vmem:[#allocation7 + $0xaa8] sm:$0xff]
        %v2538 = vld [vmem:[#allocation7 + $0xab0] sm:$0xff]
        %v2539 = vld [vmem:[#allocation7 + $0xab8] sm:$0xff]
        %v2540 = vld [vmem:[#allocation7 + $0xac0] sm:$0xff]
        %v2541 = vld [vmem:[#allocation7 + $0xac8] sm:$0xff]
        %v2542 = vld [vmem:[#allocation7 + $0xad0] sm:$0xff]
        %v2543 = vld [vmem:[#allocation7 + $0xad8] sm:$0xff]
        %v2544 = vld [vmem:[#allocation7 + $0xae0] sm:$0xff]
        %v2545 = vld [vmem:[#allocation7 + $0xae8] sm:$0xff]
        %v2546 = vld [vmem:[#allocation7 + $0xaf0] sm:$0xff]
        %v2547 = vld [vmem:[#allocation7 + $0xaf8] sm:$0xff]
        %v2548 = vld [vmem:[#allocation7 + $0xb00] sm:$0xff]
        %v2549 = vld [vmem:[#allocation7 + $0xb08] sm:$0xff]
        %v2550 = vld [vmem:[#allocation7 + $0xb10] sm:$0xff]
        %v2551 = vld [vmem:[#allocation7 + $0xb18] sm:$0xff]
        %v2552 = vld [vmem:[#allocation7 + $0xb20] sm:$0xff]
        %v2553 = vld [vmem:[#allocation7 + $0xb28] sm:$0xff]
        %v2554 = vld [vmem:[#allocation7 + $0xb30] sm:$0xff]
        %v2555 = vld [vmem:[#allocation7 + $0xb38] sm:$0xff]
        %v2556 = vld [vmem:[#allocation7 + $0xb40] sm:$0xff]
        %v2557 = vld [vmem:[#allocation7 + $0xb48] sm:$0xff]
        %v2558 = vld [vmem:[#allocation7 + $0xb50] sm:$0xff]
        %v2559 = vld [vmem:[#allocation7 + $0xb58] sm:$0xff]
        %v2560 = vld [vmem:[#allocation7 + $0xb60] sm:$0xff]
        %v2561 = vld [vmem:[#allocation7 + $0xb68] sm:$0xff]
        %v2562 = vld [vmem:[#allocation7 + $0xb70] sm:$0xff]
        %v2563 = vld [vmem:[#allocation7 + $0xb78] sm:$0xff]
        %v2564 = vld [vmem:[#allocation7 + $0xb80] sm:$0xff]
        %v2565 = vld [vmem:[#allocation7 + $0xb88] sm:$0xff]
        %v2566 = vld [vmem:[#allocation7 + $0xb90] sm:$0xff]
        %v2567 = vld [vmem:[#allocation7 + $0xb98] sm:$0xff]
        %v2568 = vld [vmem:[#allocation7 + $0xba0] sm:$0xff]
        %v2569 = vld [vmem:[#allocation7 + $0xba8] sm:$0xff]
        %v2570 = vld [vmem:[#allocation7 + $0xbb0] sm:$0xff]
        %v2571 = vld [vmem:[#allocation7 + $0xbb8] sm:$0xff]
        %v2572 = vld [vmem:[#allocation7 + $0xbc0] sm:$0xff]
        %v2573 = vld [vmem:[#allocation7 + $0xbc8] sm:$0xff]
        %v2574 = vld [vmem:[#allocation7 + $0xbd0] sm:$0xff]
        %v2575 = vld [vmem:[#allocation7 + $0xbd8] sm:$0xff]
        %v2576 = vld [vmem:[#allocation7 + $0xbe0] sm:$0xff]
        %v2577 = vld [vmem:[#allocation7 + $0xbe8] sm:$0xff]
        %v2578 = vld [vmem:[#allocation7 + $0xbf0] sm:$0xff]
        %v2579 = vld [vmem:[#allocation7 + $0xbf8] sm:$0xff]
        %vm2580 = vsmask.f32 6400
        %v2581 = vrot.slane %v511, 1
        %v2582 = vrot.slane %v513, 2
        %v2583 = vor.u32 %v2581, %v2582
        %v2584 = vshrl.u32 %v411, 16
        %v2586 = vrot.slane %v2584, 1
        %v2587 = vrot.slane %v518, 2
        %v2588 = vor.u32 %v2586, %v2587
        %v2589 = vsel %vm2580, %v2583, %v2588
        %v2590 = vrot.slane %v523, 1
        %v2591 = vrot.slane %v525, 2
        %v2592 = vor.u32 %v2590, %v2591
        %v2593 = vshrl.u32 %v412, 16
        %v2595 = vrot.slane %v2593, 1
        %v2596 = vrot.slane %v530, 2
        %v2597 = vor.u32 %v2595, %v2596
        %v2598 = vsel %vm2580, %v2592, %v2597
        %v2697 = vunpack.c.l.b16 %v2484
        %v2698 = vunpack.c.h.b16 %v2484
        %v2699 = vunpack.c.l.b16 %v2485
        %v2700 = vunpack.c.h.b16 %v2485
        %v2701 = vunpack.c.l.b16 %v2486
        %v2702 = vunpack.c.h.b16 %v2486
        %v2703 = vunpack.c.l.b16 %v2487
        %v2704 = vunpack.c.h.b16 %v2487
        %v2705 = vunpack.c.l.b16 %v2488
        %v2706 = vunpack.c.h.b16 %v2488
        %v2707 = vunpack.c.l.b16 %v2489
        %v2708 = vunpack.c.h.b16 %v2489
        %v2709 = vunpack.c.l.b16 %v2490
        %v2710 = vunpack.c.h.b16 %v2490
        %v2711 = vunpack.c.l.b16 %v2491
        %v2712 = vunpack.c.h.b16 %v2491
        %v2713 = vunpack.c.l.b16 %v2492
        %v2714 = vunpack.c.h.b16 %v2492
        %v2715 = vunpack.c.l.b16 %v2493
        %v2716 = vunpack.c.h.b16 %v2493
        %v2717 = vunpack.c.l.b16 %v2494
        %v2718 = vunpack.c.h.b16 %v2494
        %v2719 = vunpack.c.l.b16 %v2495
        %v2720 = vunpack.c.h.b16 %v2495
        %v2721 = vunpack.c.l.b16 %v2496
        %v2722 = vunpack.c.h.b16 %v2496
        %v2723 = vunpack.c.l.b16 %v2497
        %v2724 = vunpack.c.h.b16 %v2497
        %v2725 = vunpack.c.l.b16 %v2498
        %v2726 = vunpack.c.h.b16 %v2498
        %v2727 = vunpack.c.l.b16 %v2499
        %v2728 = vunpack.c.h.b16 %v2499
        %v2729 = vunpack.c.l.b16 %v2500
        %v2730 = vunpack.c.h.b16 %v2500
        %v2731 = vunpack.c.l.b16 %v2501
        %v2732 = vunpack.c.h.b16 %v2501
        %v2733 = vunpack.c.l.b16 %v2502
        %v2734 = vunpack.c.h.b16 %v2502
        %v2735 = vunpack.c.l.b16 %v2503
        %v2736 = vunpack.c.h.b16 %v2503
        %v2737 = vunpack.c.l.b16 %v2504
        %v2738 = vunpack.c.h.b16 %v2504
        %v2739 = vunpack.c.l.b16 %v2505
        %v2740 = vunpack.c.h.b16 %v2505
        %v2741 = vunpack.c.l.b16 %v2506
        %v2742 = vunpack.c.h.b16 %v2506
        %v2743 = vunpack.c.l.b16 %v2507
        %v2744 = vunpack.c.h.b16 %v2507
        %v2745 = vunpack.c.l.b16 %v2508
        %v2746 = vunpack.c.h.b16 %v2508
        %v2747 = vunpack.c.l.b16 %v2509
        %v2748 = vunpack.c.h.b16 %v2509
        %v2749 = vunpack.c.l.b16 %v2510
        %v2750 = vunpack.c.h.b16 %v2510
        %v2751 = vunpack.c.l.b16 %v2511
        %v2752 = vunpack.c.h.b16 %v2511
        %v2753 = vunpack.c.l.b16 %v2512
        %v2754 = vunpack.c.h.b16 %v2512
        %v2755 = vunpack.c.l.b16 %v2513
        %v2756 = vunpack.c.h.b16 %v2513
        %v2757 = vunpack.c.l.b16 %v2514
        %v2758 = vunpack.c.h.b16 %v2514
        %v2759 = vunpack.c.l.b16 %v2515
        %v2760 = vunpack.c.h.b16 %v2515
        %v2761 = vunpack.c.l.b16 %v2516
        %v2762 = vunpack.c.h.b16 %v2516
        %v2763 = vunpack.c.l.b16 %v2517
        %v2764 = vunpack.c.h.b16 %v2517
        %v2765 = vunpack.c.l.b16 %v2518
        %v2766 = vunpack.c.h.b16 %v2518
        %v2767 = vunpack.c.l.b16 %v2519
        %v2768 = vunpack.c.h.b16 %v2519
        %v2769 = vunpack.c.l.b16 %v2520
        %v2770 = vunpack.c.h.b16 %v2520
        %v2771 = vunpack.c.l.b16 %v2521
        %v2772 = vunpack.c.h.b16 %v2521
        %v2773 = vunpack.c.l.b16 %v2522
        %v2774 = vunpack.c.h.b16 %v2522
        %v2775 = vunpack.c.l.b16 %v2523
        %v2776 = vunpack.c.h.b16 %v2523
        %v2777 = vunpack.c.l.b16 %v2524
        %v2778 = vunpack.c.h.b16 %v2524
        %v2779 = vunpack.c.l.b16 %v2525
        %v2780 = vunpack.c.h.b16 %v2525
        %v2781 = vunpack.c.l.b16 %v2526
        %v2782 = vunpack.c.h.b16 %v2526
        %v2783 = vunpack.c.l.b16 %v2527
        %v2784 = vunpack.c.h.b16 %v2527
        %v2785 = vunpack.c.l.b16 %v2528
        %v2786 = vunpack.c.h.b16 %v2528
        %v2787 = vunpack.c.l.b16 %v2529
        %v2788 = vunpack.c.h.b16 %v2529
        %v2789 = vunpack.c.l.b16 %v2530
        %v2790 = vunpack.c.h.b16 %v2530
        %v2791 = vunpack.c.l.b16 %v2531
        %v2792 = vunpack.c.h.b16 %v2531
        %v2793 = vunpack.c.l.b16 %v2532
        %v2794 = vunpack.c.h.b16 %v2532
        %v2795 = vunpack.c.l.b16 %v2533
        %v2796 = vunpack.c.h.b16 %v2533
        %v2797 = vunpack.c.l.b16 %v2534
        %v2798 = vunpack.c.h.b16 %v2534
        %v2799 = vunpack.c.l.b16 %v2535
        %v2800 = vunpack.c.h.b16 %v2535
        %v2801 = vunpack.c.l.b16 %v2536
        %v2802 = vunpack.c.h.b16 %v2536
        %v2803 = vunpack.c.l.b16 %v2537
        %v2804 = vunpack.c.h.b16 %v2537
        %v2805 = vunpack.c.l.b16 %v2538
        %v2806 = vunpack.c.h.b16 %v2538
        %v2807 = vunpack.c.l.b16 %v2539
        %v2808 = vunpack.c.h.b16 %v2539
        %v2809 = vunpack.c.l.b16 %v2540
        %v2810 = vunpack.c.h.b16 %v2540
        %v2811 = vunpack.c.l.b16 %v2541
        %v2812 = vunpack.c.h.b16 %v2541
        %v2813 = vunpack.c.l.b16 %v2542
        %v2814 = vunpack.c.h.b16 %v2542
        %v2815 = vunpack.c.l.b16 %v2543
        %v2816 = vunpack.c.h.b16 %v2543
        %v2817 = vunpack.c.l.b16 %v2544
        %v2818 = vunpack.c.h.b16 %v2544
        %v2819 = vunpack.c.l.b16 %v2545
        %v2820 = vunpack.c.h.b16 %v2545
        %v2821 = vunpack.c.l.b16 %v2546
        %v2822 = vunpack.c.h.b16 %v2546
        %v2823 = vunpack.c.l.b16 %v2547
        %v2824 = vunpack.c.h.b16 %v2547
        %v2825 = vunpack.c.l.b16 %v2548
        %v2826 = vunpack.c.h.b16 %v2548
        %v2827 = vunpack.c.l.b16 %v2549
        %v2828 = vunpack.c.h.b16 %v2549
        %v2829 = vunpack.c.l.b16 %v2550
        %v2830 = vunpack.c.h.b16 %v2550
        %v2831 = vunpack.c.l.b16 %v2551
        %v2832 = vunpack.c.h.b16 %v2551
        %v2833 = vunpack.c.l.b16 %v2552
        %v2834 = vunpack.c.h.b16 %v2552
        %v2835 = vunpack.c.l.b16 %v2553
        %v2836 = vunpack.c.h.b16 %v2553
        %v2837 = vunpack.c.l.b16 %v2554
        %v2838 = vunpack.c.h.b16 %v2554
        %v2839 = vunpack.c.l.b16 %v2555
        %v2840 = vunpack.c.h.b16 %v2555
        %v2841 = vunpack.c.l.b16 %v2556
        %v2842 = vunpack.c.h.b16 %v2556
        %v2843 = vunpack.c.l.b16 %v2557
        %v2844 = vunpack.c.h.b16 %v2557
        %v2845 = vunpack.c.l.b16 %v2558
        %v2846 = vunpack.c.h.b16 %v2558
        %v2847 = vunpack.c.l.b16 %v2559
        %v2848 = vunpack.c.h.b16 %v2559
        %v2849 = vunpack.c.l.b16 %v2560
        %v2850 = vunpack.c.h.b16 %v2560
        %v2851 = vunpack.c.l.b16 %v2561
        %v2852 = vunpack.c.h.b16 %v2561
        %v2853 = vunpack.c.l.b16 %v2562
        %v2854 = vunpack.c.h.b16 %v2562
        %v2855 = vunpack.c.l.b16 %v2563
        %v2856 = vunpack.c.h.b16 %v2563
        %v2857 = vunpack.c.l.b16 %v2564
        %v2858 = vunpack.c.h.b16 %v2564
        %v2859 = vunpack.c.l.b16 %v2565
        %v2860 = vunpack.c.h.b16 %v2565
        %v2861 = vunpack.c.l.b16 %v2566
        %v2862 = vunpack.c.h.b16 %v2566
        %v2863 = vunpack.c.l.b16 %v2567
        %v2864 = vunpack.c.h.b16 %v2567
        %v2865 = vunpack.c.l.b16 %v2568
        %v2866 = vunpack.c.h.b16 %v2568
        %v2867 = vunpack.c.l.b16 %v2569
        %v2868 = vunpack.c.h.b16 %v2569
        %v2869 = vunpack.c.l.b16 %v2570
        %v2870 = vunpack.c.h.b16 %v2570
        %v2871 = vunpack.c.l.b16 %v2571
        %v2872 = vunpack.c.h.b16 %v2571
        %v2873 = vunpack.c.l.b16 %v2572
        %v2874 = vunpack.c.h.b16 %v2572
        %v2875 = vunpack.c.l.b16 %v2573
        %v2876 = vunpack.c.h.b16 %v2573
        %v2877 = vunpack.c.l.b16 %v2574
        %v2878 = vunpack.c.h.b16 %v2574
        %v2879 = vunpack.c.l.b16 %v2575
        %v2880 = vunpack.c.h.b16 %v2575
        %v2881 = vunpack.c.l.b16 %v2576
        %v2882 = vunpack.c.h.b16 %v2576
        %v2883 = vunpack.c.l.b16 %v2577
        %v2884 = vunpack.c.h.b16 %v2577
        %v2885 = vunpack.c.l.b16 %v2578
        %v2886 = vunpack.c.h.b16 %v2578
        %v2887 = vunpack.c.l.b16 %v2579
        %v2888 = vunpack.c.h.b16 %v2579
        %v2889 = vpack.c.b16 %v2703, %v2697
        %v2890 = vpack.c.b16 %v2704, %v2698
        %v2891 = vpack.c.b16 %v2705, %v2699
        %v2892 = vpack.c.b16 %v2706, %v2700
        %v2893 = vpack.c.b16 %v2707, %v2701
        %v2894 = vpack.c.b16 %v2708, %v2702
        %v2895 = vpack.c.b16 %v2715, %v2709
        %v2896 = vpack.c.b16 %v2716, %v2710
        %v2897 = vpack.c.b16 %v2717, %v2711
        %v2898 = vpack.c.b16 %v2718, %v2712
        %v2899 = vpack.c.b16 %v2719, %v2713
        %v2900 = vpack.c.b16 %v2720, %v2714
        %v2901 = vpack.c.b16 %v2727, %v2721
        %v2902 = vpack.c.b16 %v2728, %v2722
        %v2903 = vpack.c.b16 %v2729, %v2723
        %v2904 = vpack.c.b16 %v2730, %v2724
        %v2905 = vpack.c.b16 %v2731, %v2725
        %v2906 = vpack.c.b16 %v2732, %v2726
        %v2907 = vpack.c.b16 %v2739, %v2733
        %v2908 = vpack.c.b16 %v2740, %v2734
        %v2909 = vpack.c.b16 %v2741, %v2735
        %v2910 = vpack.c.b16 %v2742, %v2736
        %v2911 = vpack.c.b16 %v2743, %v2737
        %v2912 = vpack.c.b16 %v2744, %v2738
        %v2913 = vpack.c.b16 %v2751, %v2745
        %v2914 = vpack.c.b16 %v2752, %v2746
        %v2915 = vpack.c.b16 %v2753, %v2747
        %v2916 = vpack.c.b16 %v2754, %v2748
        %v2917 = vpack.c.b16 %v2755, %v2749
        %v2918 = vpack.c.b16 %v2756, %v2750
        %v2919 = vpack.c.b16 %v2763, %v2757
        %v2920 = vpack.c.b16 %v2764, %v2758
        %v2921 = vpack.c.b16 %v2765, %v2759
        %v2922 = vpack.c.b16 %v2766, %v2760
        %v2923 = vpack.c.b16 %v2767, %v2761
        %v2924 = vpack.c.b16 %v2768, %v2762
        %v2925 = vpack.c.b16 %v2775, %v2769
        %v2926 = vpack.c.b16 %v2776, %v2770
        %v2927 = vpack.c.b16 %v2777, %v2771
        %v2928 = vpack.c.b16 %v2778, %v2772
        %v2929 = vpack.c.b16 %v2779, %v2773
        %v2930 = vpack.c.b16 %v2780, %v2774
        %v2931 = vpack.c.b16 %v2787, %v2781
        %v2932 = vpack.c.b16 %v2788, %v2782
        %v2933 = vpack.c.b16 %v2789, %v2783
        %v2934 = vpack.c.b16 %v2790, %v2784
        %v2935 = vpack.c.b16 %v2791, %v2785
        %v2936 = vpack.c.b16 %v2792, %v2786
        %v2937 = vpack.c.b16 %v2799, %v2793
        %v2938 = vpack.c.b16 %v2800, %v2794
        %v2939 = vpack.c.b16 %v2801, %v2795
        %v2940 = vpack.c.b16 %v2802, %v2796
        %v2941 = vpack.c.b16 %v2803, %v2797
        %v2942 = vpack.c.b16 %v2804, %v2798
        %v2943 = vpack.c.b16 %v2811, %v2805
        %v2944 = vpack.c.b16 %v2812, %v2806
        %v2945 = vpack.c.b16 %v2813, %v2807
        %v2946 = vpack.c.b16 %v2814, %v2808
        %v2947 = vpack.c.b16 %v2815, %v2809
        %v2948 = vpack.c.b16 %v2816, %v2810
        %v2949 = vpack.c.b16 %v2823, %v2817
        %v2950 = vpack.c.b16 %v2824, %v2818
        %v2951 = vpack.c.b16 %v2825, %v2819
        %v2952 = vpack.c.b16 %v2826, %v2820
        %v2953 = vpack.c.b16 %v2827, %v2821
        %v2954 = vpack.c.b16 %v2828, %v2822
        %v2955 = vpack.c.b16 %v2835, %v2829
        %v2956 = vpack.c.b16 %v2836, %v2830
        %v2957 = vpack.c.b16 %v2837, %v2831
        %v2958 = vpack.c.b16 %v2838, %v2832
        %v2959 = vpack.c.b16 %v2839, %v2833
        %v2960 = vpack.c.b16 %v2840, %v2834
        %v2961 = vpack.c.b16 %v2847, %v2841
        %v2962 = vpack.c.b16 %v2848, %v2842
        %v2963 = vpack.c.b16 %v2849, %v2843
        %v2964 = vpack.c.b16 %v2850, %v2844
        %v2965 = vpack.c.b16 %v2851, %v2845
        %v2966 = vpack.c.b16 %v2852, %v2846
        %v2967 = vpack.c.b16 %v2859, %v2853
        %v2968 = vpack.c.b16 %v2860, %v2854
        %v2969 = vpack.c.b16 %v2861, %v2855
        %v2970 = vpack.c.b16 %v2862, %v2856
        %v2971 = vpack.c.b16 %v2863, %v2857
        %v2972 = vpack.c.b16 %v2864, %v2858
        %v2973 = vpack.c.b16 %v2871, %v2865
        %v2974 = vpack.c.b16 %v2872, %v2866
        %v2975 = vpack.c.b16 %v2873, %v2867
        %v2976 = vpack.c.b16 %v2874, %v2868
        %v2977 = vpack.c.b16 %v2875, %v2869
        %v2978 = vpack.c.b16 %v2876, %v2870
        %v2979 = vpack.c.b16 %v2883, %v2877
        %v2980 = vpack.c.b16 %v2884, %v2878
        %v2981 = vpack.c.b16 %v2885, %v2879
        %v2982 = vpack.c.b16 %v2886, %v2880
        %v2983 = vpack.c.b16 %v2887, %v2881
        %v2984 = vpack.c.b16 %v2888, %v2882
        %3081 = vmatprep.subr.bf16.mxu0 %v2890
        %3082 = vmatpush1.bf16.msra.mxu0 %v2889
        %3083 = vmatprep.subr.bf16.mxu0 %v2896
        %3084 = vmatpush1.bf16.msra.mxu0 %v2895
        %3085 = vmatprep.subr.bf16.mxu0 %v2902
        %3086 = vmatpush1.bf16.msra.mxu0 %v2901
        %3087 = vmatprep.subr.bf16.mxu0 %v2908
        %3088 = vmatpush1.bf16.msra.mxu0 %v2907
        %3089 = vmatprep.subr.bf16.mxu0 %v2914
        %3090 = vmatpush1.bf16.msra.mxu0 %v2913
        %3091 = vmatprep.subr.bf16.mxu0 %v2920
        %3092 = vmatpush1.bf16.msra.mxu0 %v2919
        %3093 = vmatprep.subr.bf16.mxu0 %v2926
        %3094 = vmatpush1.bf16.msra.mxu0 %v2925
        %3095 = vmatprep.subr.bf16.mxu0 %v2932
        %3096 = vmatpush1.bf16.msra.mxu0 %v2931
        %3097 = vmatprep.subr.bf16.mxu0 %v2938
        %3098 = vmatpush1.bf16.msra.mxu0 %v2937
        %3099 = vmatprep.subr.bf16.mxu0 %v2944
        %3100 = vmatpush1.bf16.msra.mxu0 %v2943
        %3101 = vmatprep.subr.bf16.mxu0 %v2950
        %3102 = vmatpush1.bf16.msra.mxu0 %v2949
        %3103 = vmatprep.subr.bf16.mxu0 %v2956
        %3104 = vmatpush1.bf16.msra.mxu0 %v2955
        %3105 = vmatprep.subr.bf16.mxu0 %v2962
        %3106 = vmatpush1.bf16.msra.mxu0 %v2961
        %3107 = vmatprep.subr.bf16.mxu0 %v2968
        %3108 = vmatpush1.bf16.msra.mxu0 %v2967
        %3109 = vmatprep.subr.bf16.mxu0 %v2974
        %3110 = vmatpush1.bf16.msra.mxu0 %v2973
        %3111 = vmatprep.subr.bf16.mxu0 %v2980
        %3112 = vmatpush1.bf16.msra.mxu0 %v2979
        %3113 = vmatprep.mubr.bf16.mxu0 %v2598
        %3114 = vmatmul.mubr.bf16.gmra.mrb[0].mxu0 %v2589
        %v3115 = vpop.f32.mrb[0].mxu0
        %v3116 = vadd.f32 0.0, %v3115
        %v3117 = vpop.f32.mrb[0].mxu0
        %v3118 = vadd.f32 0.0, %v3117
        %v3119 = vpop.f32.mrb[0].mxu0
        %v3120 = vadd.f32 0.0, %v3119
        %v3121 = vpop.f32.mrb[0].mxu0
        %v3122 = vadd.f32 0.0, %v3121
        %3123 = vdwg.mxu0
        %3124 = vmatprep.subr.bf16.mxu0 %v2892
        %3125 = vmatpush1.bf16.msra.mxu0 %v2891
        %3126 = vmatprep.subr.bf16.mxu0 %v2898
        %3127 = vmatpush1.bf16.msra.mxu0 %v2897
        %3128 = vmatprep.subr.bf16.mxu0 %v2904
        %3129 = vmatpush1.bf16.msra.mxu0 %v2903
        %3130 = vmatprep.subr.bf16.mxu0 %v2910
        %3131 = vmatpush1.bf16.msra.mxu0 %v2909
        %3132 = vmatprep.subr.bf16.mxu0 %v2916
        %3133 = vmatpush1.bf16.msra.mxu0 %v2915
        %3134 = vmatprep.subr.bf16.mxu0 %v2922
        %3135 = vmatpush1.bf16.msra.mxu0 %v2921
        %3136 = vmatprep.subr.bf16.mxu0 %v2928
        %3137 = vmatpush1.bf16.msra.mxu0 %v2927
        %3138 = vmatprep.subr.bf16.mxu0 %v2934
        %3139 = vmatpush1.bf16.msra.mxu0 %v2933
        %3140 = vmatprep.subr.bf16.mxu0 %v2940
        %3141 = vmatpush1.bf16.msra.mxu0 %v2939
        %3142 = vmatprep.subr.bf16.mxu0 %v2946
        %3143 = vmatpush1.bf16.msra.mxu0 %v2945
        %3144 = vmatprep.subr.bf16.mxu0 %v2952
        %3145 = vmatpush1.bf16.msra.mxu0 %v2951
        %3146 = vmatprep.subr.bf16.mxu0 %v2958
        %3147 = vmatpush1.bf16.msra.mxu0 %v2957
        %3148 = vmatprep.subr.bf16.mxu0 %v2964
        %3149 = vmatpush1.bf16.msra.mxu0 %v2963
        %3150 = vmatprep.subr.bf16.mxu0 %v2970
        %3151 = vmatpush1.bf16.msra.mxu0 %v2969
        %3152 = vmatprep.subr.bf16.mxu0 %v2976
        %3153 = vmatpush1.bf16.msra.mxu0 %v2975
        %3154 = vmatprep.subr.bf16.mxu0 %v2982
        %3155 = vmatpush1.bf16.msra.mxu0 %v2981
        %3156 = vmatprep.mubr.bf16.mxu0 %v2598
        %3157 = vmatmul.mubr.bf16.gmra.mrb[0].mxu0 %v2589
        %v3158 = vpop.f32.mrb[0].mxu0
        %v3159 = vadd.f32 0.0, %v3158
        %v3160 = vpop.f32.mrb[0].mxu0
        %v3161 = vadd.f32 0.0, %v3160
        %v3162 = vpop.f32.mrb[0].mxu0
        %v3163 = vadd.f32 0.0, %v3162
        %v3164 = vpop.f32.mrb[0].mxu0
        %v3165 = vadd.f32 0.0, %v3164
        %3166 = vdwg.mxu0
        %3167 = vmatprep.subr.bf16.mxu0 %v2894
        %3168 = vmatpush1.bf16.msra.mxu0 %v2893
        %3169 = vmatprep.subr.bf16.mxu0 %v2900
        %3170 = vmatpush1.bf16.msra.mxu0 %v2899
        %3171 = vmatprep.subr.bf16.mxu0 %v2906
        %3172 = vmatpush1.bf16.msra.mxu0 %v2905
        %3173 = vmatprep.subr.bf16.mxu0 %v2912
        %3174 = vmatpush1.bf16.msra.mxu0 %v2911
        %3175 = vmatprep.subr.bf16.mxu0 %v2918
        %3176 = vmatpush1.bf16.msra.mxu0 %v2917
        %3177 = vmatprep.subr.bf16.mxu0 %v2924
        %3178 = vmatpush1.bf16.msra.mxu0 %v2923
        %3179 = vmatprep.subr.bf16.mxu0 %v2930
        %3180 = vmatpush1.bf16.msra.mxu0 %v2929
        %3181 = vmatprep.subr.bf16.mxu0 %v2936
        %3182 = vmatpush1.bf16.msra.mxu0 %v2935
        %3183 = vmatprep.subr.bf16.mxu0 %v2942
        %3184 = vmatpush1.bf16.msra.mxu0 %v2941
        %3185 = vmatprep.subr.bf16.mxu0 %v2948
        %3186 = vmatpush1.bf16.msra.mxu0 %v2947
        %3187 = vmatprep.subr.bf16.mxu0 %v2954
        %3188 = vmatpush1.bf16.msra.mxu0 %v2953
        %3189 = vmatprep.subr.bf16.mxu0 %v2960
        %3190 = vmatpush1.bf16.msra.mxu0 %v2959
        %3191 = vmatprep.subr.bf16.mxu0 %v2966
        %3192 = vmatpush1.bf16.msra.mxu0 %v2965
        %3193 = vmatprep.subr.bf16.mxu0 %v2972
        %3194 = vmatpush1.bf16.msra.mxu0 %v2971
        %3195 = vmatprep.subr.bf16.mxu0 %v2978
        %3196 = vmatpush1.bf16.msra.mxu0 %v2977
        %3197 = vmatprep.subr.bf16.mxu0 %v2984
        %3198 = vmatpush1.bf16.msra.mxu0 %v2983
        %3199 = vmatprep.mubr.bf16.mxu0 %v2598
        %3200 = vmatmul.mubr.bf16.gmra.mrb[0].mxu0 %v2589
        %v3201 = vpop.f32.mrb[0].mxu0
        %v3202 = vadd.f32 0.0, %v3201
        %v3203 = vpop.f32.mrb[0].mxu0
        %v3204 = vadd.f32 0.0, %v3203
        %v3205 = vpop.f32.mrb[0].mxu0
        %v3206 = vadd.f32 0.0, %v3205
        %v3207 = vpop.f32.mrb[0].mxu0
        %v3208 = vadd.f32 0.0, %v3207
        %3209 = vdwg.mxu0
        %v3210 = vadd.f32 %v2472, %v3116
        %v3211 = vadd.f32 %v2473, %v3118
        %v3212 = vadd.f32 %v2474, %v3159
        %v3213 = vadd.f32 %v2475, %v3161
        %v3214 = vadd.f32 %v2476, %v3202
        %v3215 = vadd.f32 %v2477, %v3204
        %v3216 = vadd.f32 %v2478, %v3120
        %v3217 = vadd.f32 %v2479, %v3122
        %v3218 = vadd.f32 %v2480, %v3163
        %v3219 = vadd.f32 %v2481, %v3165
        %v3220 = vadd.f32 %v2482, %v3206
        %v3221 = vadd.f32 %v2483, %v3208
        %v3222 = vmul.f32 %v3210, %v3210
        %v3223 = vmul.f32 %v3211, %v3211
        %v3224 = vmul.f32 %v3212, %v3212
        %v3225 = vmul.f32 %v3216, %v3216
        %v3226 = vmul.f32 %v3217, %v3217
        %v3227 = vmul.f32 %v3218, %v3218
        %v3228 = vmul.f32 %v3213, %v3213
        %v3229 = vmul.f32 %v3214, %v3214
        %v3230 = vmul.f32 %v3215, %v3215
        %v3231 = vmul.f32 %v3219, %v3219
        %v3232 = vmul.f32 %v3220, %v3220
        %v3233 = vmul.f32 %v3221, %v3221
        %v3234 = vadd.f32 %v3222, %v3228
        %v3235 = vadd.f32 %v3223, %v3229
        %v3236 = vadd.f32 %v3224, %v3230
        %v3237 = vadd.f32 %v3225, %v3231
        %v3238 = vadd.f32 %v3226, %v3232
        %v3239 = vadd.f32 %v3227, %v3233
        %v3240 = vrsqrt.pop %v3234
        %v3241 = vmul.f32 %v3234, %v3240
        %vm3242 = vcmp.eq.f32.partialorder %v3234, inf
        %v3243 = vsel %vm3242, %v3234, %v3241
        %vm3244 = vcmp.eq.f32.partialorder %v3234, 0.0
        %v3245 = vand.u32 %v3234, 2147483648
        %v3246 = vsel %vm3244, %v3245, %v3243
        %v3247 = vrsqrt.pop %v3235
        %v3248 = vmul.f32 %v3235, %v3247
        %vm3249 = vcmp.eq.f32.partialorder %v3235, inf
        %v3250 = vsel %vm3249, %v3235, %v3248
        %vm3251 = vcmp.eq.f32.partialorder %v3235, 0.0
        %v3252 = vand.u32 %v3235, 2147483648
        %v3253 = vsel %vm3251, %v3252, %v3250
        %v3254 = vrsqrt.pop %v3236
        %v3255 = vmul.f32 %v3236, %v3254
        %vm3256 = vcmp.eq.f32.partialorder %v3236, inf
        %v3257 = vsel %vm3256, %v3236, %v3255
        %vm3258 = vcmp.eq.f32.partialorder %v3236, 0.0
        %v3259 = vand.u32 %v3236, 2147483648
        %v3260 = vsel %vm3258, %v3259, %v3257
        %v3261 = vrsqrt.pop %v3237
        %v3262 = vmul.f32 %v3237, %v3261
        %vm3263 = vcmp.eq.f32.partialorder %v3237, inf
        %v3264 = vsel %vm3263, %v3237, %v3262
        %vm3265 = vcmp.eq.f32.partialorder %v3237, 0.0
        %v3266 = vand.u32 %v3237, 2147483648
        %v3267 = vsel %vm3265, %v3266, %v3264
        %v3268 = vrsqrt.pop %v3238
        %v3269 = vmul.f32 %v3238, %v3268
        %vm3270 = vcmp.eq.f32.partialorder %v3238, inf
        %v3271 = vsel %vm3270, %v3238, %v3269
        %vm3272 = vcmp.eq.f32.partialorder %v3238, 0.0
        %v3273 = vand.u32 %v3238, 2147483648
        %v3274 = vsel %vm3272, %v3273, %v3271
        %v3275 = vrsqrt.pop %v3239
        %v3276 = vmul.f32 %v3239, %v3275
        %vm3277 = vcmp.eq.f32.partialorder %v3239, inf
        %v3278 = vsel %vm3277, %v3239, %v3276
        %vm3279 = vcmp.eq.f32.partialorder %v3239, 0.0
        %v3280 = vand.u32 %v3239, 2147483648
        %v3281 = vsel %vm3279, %v3280, %v3278
        %v3282 = vpack.c.bf16 %v3267, %v3246
        %v3283 = vpack.c.bf16 %v3274, %v3253
        %v3284 = vpack.c.bf16 %v3281, %v3260
        %v3285 = vld [vmem:[#allocation8] sm:$0xf]
        %v3286 = vld [vmem:[#allocation8 + $0x4] sm:$0xf]
        %v3287 = vld [vmem:[#allocation8 + $0x8] sm:$0xf]
        %v3288 = vld [vmem:[#allocation8 + $0xc] sm:$0xf]
        %v3289 = vld [vmem:[#allocation8 + $0x10] sm:$0xf]
        %v3290 = vld [vmem:[#allocation8 + $0x14] sm:$0xf]
        %v3291 = vld [vmem:[#allocation8 + $0x18] sm:$0xf]
        %v3292 = vld [vmem:[#allocation8 + $0x1c] sm:$0xf]
        %v3293 = vld [vmem:[#allocation8 + $0x20] sm:$0xf]
        %v3294 = vld [vmem:[#allocation8 + $0x24] sm:$0xf]
        %v3295 = vld [vmem:[#allocation8 + $0x28] sm:$0xf]
        %v3296 = vld [vmem:[#allocation8 + $0x2c] sm:$0xf]
        %v3297 = vld [vmem:[#allocation8 + $0x30] sm:$0xf]
        %v3298 = vld [vmem:[#allocation8 + $0x34] sm:$0xf]
        %v3299 = vld [vmem:[#allocation8 + $0x38] sm:$0xf]
        %v3300 = vld [vmem:[#allocation8 + $0x3c] sm:$0xf]
        %v3301 = vld [vmem:[#allocation8 + $0x40] sm:$0xf]
        %v3302 = vld [vmem:[#allocation8 + $0x44] sm:$0xf]
        %v3303 = vld [vmem:[#allocation8 + $0x48] sm:$0xf]
        %v3304 = vld [vmem:[#allocation8 + $0x4c] sm:$0xf]
        %v3305 = vld [vmem:[#allocation8 + $0x50] sm:$0xf]
        %v3306 = vld [vmem:[#allocation8 + $0x54] sm:$0xf]
        %v3307 = vld [vmem:[#allocation8 + $0x58] sm:$0xf]
        %v3308 = vld [vmem:[#allocation8 + $0x5c] sm:$0xf]
        %v3309 = vld [vmem:[#allocation8 + $0x60] sm:$0xf]
        %v3310 = vld [vmem:[#allocation8 + $0x64] sm:$0xf]
        %v3311 = vld [vmem:[#allocation8 + $0x68] sm:$0xf]
        %v3312 = vld [vmem:[#allocation8 + $0x6c] sm:$0xf]
        %v3313 = vld [vmem:[#allocation8 + $0x70] sm:$0xf]
        %v3314 = vld [vmem:[#allocation8 + $0x74] sm:$0xf]
        %v3315 = vld [vmem:[#allocation8 + $0x78] sm:$0xf]
        %v3316 = vld [vmem:[#allocation8 + $0x7c] sm:$0xf]
        %v3317 = vld [vmem:[#allocation8 + $0x80] sm:$0xf]
        %v3318 = vld [vmem:[#allocation8 + $0x84] sm:$0xf]
        %v3319 = vld [vmem:[#allocation8 + $0x88] sm:$0xf]
        %v3320 = vld [vmem:[#allocation8 + $0x8c] sm:$0xf]
        %v3321 = vld [vmem:[#allocation8 + $0x90] sm:$0xf]
        %v3322 = vld [vmem:[#allocation8 + $0x94] sm:$0xf]
        %v3323 = vld [vmem:[#allocation8 + $0x98] sm:$0xf]
        %v3324 = vld [vmem:[#allocation8 + $0x9c] sm:$0xf]
        %v3325 = vld [vmem:[#allocation8 + $0xa0] sm:$0xf]
        %v3326 = vld [vmem:[#allocation8 + $0xa4] sm:$0xf]
        %v3327 = vld [vmem:[#allocation8 + $0xa8] sm:$0xf]
        %v3328 = vld [vmem:[#allocation8 + $0xac] sm:$0xf]
        %v3329 = vld [vmem:[#allocation8 + $0xb0] sm:$0xf]
        %v3330 = vld [vmem:[#allocation8 + $0xb4] sm:$0xf]
        %v3331 = vld [vmem:[#allocation8 + $0xb8] sm:$0xf]
        %v3332 = vld [vmem:[#allocation8 + $0xbc] sm:$0xf]
        %v3381 = vunpack.c.l.b16 %v3285
        %v3382 = vunpack.c.l.b16 %v3286
        %v3383 = vunpack.c.l.b16 %v3287
        %v3384 = vunpack.c.l.b16 %v3288
        %v3385 = vunpack.c.l.b16 %v3289
        %v3386 = vunpack.c.l.b16 %v3290
        %v3387 = vunpack.c.l.b16 %v3291
        %v3388 = vunpack.c.l.b16 %v3292
        %v3389 = vunpack.c.l.b16 %v3293
        %v3390 = vunpack.c.l.b16 %v3294
        %v3391 = vunpack.c.l.b16 %v3295
        %v3392 = vunpack.c.l.b16 %v3296
        %v3393 = vunpack.c.l.b16 %v3297
        %v3394 = vunpack.c.l.b16 %v3298
        %v3395 = vunpack.c.l.b16 %v3299
        %v3396 = vunpack.c.l.b16 %v3300
        %v3397 = vunpack.c.l.b16 %v3301
        %v3398 = vunpack.c.l.b16 %v3302
        %v3399 = vunpack.c.l.b16 %v3303
        %v3400 = vunpack.c.l.b16 %v3304
        %v3401 = vunpack.c.l.b16 %v3305
        %v3402 = vunpack.c.l.b16 %v3306
        %v3403 = vunpack.c.l.b16 %v3307
        %v3404 = vunpack.c.l.b16 %v3308
        %v3405 = vunpack.c.l.b16 %v3309
        %v3406 = vunpack.c.l.b16 %v3310
        %v3407 = vunpack.c.l.b16 %v3311
        %v3408 = vunpack.c.l.b16 %v3312
        %v3409 = vunpack.c.l.b16 %v3313
        %v3410 = vunpack.c.l.b16 %v3314
        %v3411 = vunpack.c.l.b16 %v3315
        %v3412 = vunpack.c.l.b16 %v3316
        %v3413 = vunpack.c.l.b16 %v3317
        %v3414 = vunpack.c.l.b16 %v3318
        %v3415 = vunpack.c.l.b16 %v3319
        %v3416 = vunpack.c.l.b16 %v3320
        %v3417 = vunpack.c.l.b16 %v3321
        %v3418 = vunpack.c.l.b16 %v3322
        %v3419 = vunpack.c.l.b16 %v3323
        %v3420 = vunpack.c.l.b16 %v3324
        %v3421 = vunpack.c.l.b16 %v3325
        %v3422 = vunpack.c.l.b16 %v3326
        %v3423 = vunpack.c.l.b16 %v3327
        %v3424 = vunpack.c.l.b16 %v3328
        %v3425 = vunpack.c.l.b16 %v3329
        %v3426 = vunpack.c.l.b16 %v3330
        %v3427 = vunpack.c.l.b16 %v3331
        %v3428 = vunpack.c.l.b16 %v3332
        %v3429 = vpack.c.b16 %v3382, %v3381
        %v3430 = vpack.c.b16 %v3384, %v3383
        %v3431 = vpack.c.b16 %v3386, %v3385
        %v3432 = vpack.c.b16 %v3388, %v3387
        %v3433 = vpack.c.b16 %v3390, %v3389
        %v3434 = vpack.c.b16 %v3392, %v3391
        %v3435 = vpack.c.b16 %v3394, %v3393
        %v3436 = vpack.c.b16 %v3396, %v3395
        %v3437 = vpack.c.b16 %v3398, %v3397
        %v3438 = vpack.c.b16 %v3400, %v3399
        %v3439 = vpack.c.b16 %v3402, %v3401
        %v3440 = vpack.c.b16 %v3404, %v3403
        %v3441 = vpack.c.b16 %v3406, %v3405
        %v3442 = vpack.c.b16 %v3408, %v3407
        %v3443 = vpack.c.b16 %v3410, %v3409
        %v3444 = vpack.c.b16 %v3412, %v3411
        %v3445 = vpack.c.b16 %v3414, %v3413
        %v3446 = vpack.c.b16 %v3416, %v3415
        %v3447 = vpack.c.b16 %v3418, %v3417
        %v3448 = vpack.c.b16 %v3420, %v3419
        %v3449 = vpack.c.b16 %v3422, %v3421
        %v3450 = vpack.c.b16 %v3424, %v3423
        %v3451 = vpack.c.b16 %v3426, %v3425
        %v3452 = vpack.c.b16 %v3428, %v3427
        %3477 = vmatprep.subr.bf16.mxu0 0
        %3478 = vmatpush1.bf16.msra.mxu0 %v3429
        %3479 = vmatprep.subr.bf16.mxu0 0
        %3480 = vmatpush1.bf16.msra.mxu0 %v3430
        %3481 = vmatprep.subr.bf16.mxu0 0
        %3482 = vmatpush1.bf16.msra.mxu0 %v3431
        %3483 = vmatprep.subr.bf16.mxu0 0
        %3484 = vmatpush1.bf16.msra.mxu0 %v3432
        %3485 = vmatprep.subr.bf16.mxu0 0
        %3486 = vmatpush1.bf16.msra.mxu0 %v3433
        %3487 = vmatprep.subr.bf16.mxu0 0
        %3488 = vmatpush1.bf16.msra.mxu0 %v3434
        %3489 = vmatprep.subr.bf16.mxu0 0
        %3490 = vmatpush1.bf16.msra.mxu0 %v3435
        %3491 = vmatprep.subr.bf16.mxu0 0
        %3492 = vmatpush1.bf16.msra.mxu0 %v3436
        %3493 = vmatprep.subr.bf16.mxu0 0
        %3494 = vmatpush1.bf16.msra.mxu0 %v3437
        %3495 = vmatprep.subr.bf16.mxu0 0
        %3496 = vmatpush1.bf16.msra.mxu0 %v3438
        %3497 = vmatprep.subr.bf16.mxu0 0
        %3498 = vmatpush1.bf16.msra.mxu0 %v3439
        %3499 = vmatprep.subr.bf16.mxu0 0
        %3500 = vmatpush1.bf16.msra.mxu0 %v3440
        %3501 = vmatprep.subr.bf16.mxu0 0
        %3502 = vmatpush1.bf16.msra.mxu0 %v3441
        %3503 = vmatprep.subr.bf16.mxu0 0
        %3504 = vmatpush1.bf16.msra.mxu0 %v3442
        %3505 = vmatprep.subr.bf16.mxu0 0
        %3506 = vmatpush1.bf16.msra.mxu0 %v3443
        %3507 = vmatprep.subr.bf16.mxu0 0
        %3508 = vmatpush1.bf16.msra.mxu0 %v3444
        %3509 = vmatprep.mubr.bf16.mxu0 %v3283
        %3510 = vmatmul.mubr.bf16.gmra.mrb[0].mxu0 %v3282
        %v3511 = vpop.f32.mrb[0].mxu0
        %v3512 = vadd.f32 0.0, %v3511
        %v3513 = vpop.f32.mrb[0].mxu0
        %v3514 = vpop.f32.mrb[0].mxu0
        %v3515 = vadd.f32 0.0, %v3514
        %v3516 = vpop.f32.mrb[0].mxu0
        %3517 = vdwg.mxu0
        %3518 = vmatprep.subr.bf16.mxu0 0
        %3519 = vmatpush1.bf16.msra.mxu0 %v3445
        %3520 = vmatprep.subr.bf16.mxu0 0
        %3521 = vmatpush1.bf16.msra.mxu0 %v3446
        %3522 = vmatprep.subr.bf16.mxu0 0
        %3523 = vmatpush1.bf16.msra.mxu0 %v3447
        %3524 = vmatprep.subr.bf16.mxu0 0
        %3525 = vmatpush1.bf16.msra.mxu0 %v3448
        %3526 = vmatprep.subr.bf16.mxu0 0
        %3527 = vmatpush1.bf16.msra.mxu0 %v3449
        %3528 = vmatprep.subr.bf16.mxu0 0
        %3529 = vmatpush1.bf16.msra.mxu0 %v3450
        %3530 = vmatprep.subr.bf16.mxu0 0
        %3531 = vmatpush1.bf16.msra.mxu0 %v3451
        %3532 = vmatprep.subr.bf16.mxu0 0
        %3533 = vmatpush1.bf16.msra.mxu0 %v3452
        %3534 = vmatprep.subr.bf16.mxu0 0
        %3535 = vmatpush1.bf16.msra.mxu0 0
        %3536 = vmatprep.subr.bf16.mxu0 0
        %3537 = vmatpush1.bf16.msra.mxu0 0
        %3538 = vmatprep.subr.bf16.mxu0 0
        %3539 = vmatpush1.bf16.msra.mxu0 0
        %3540 = vmatprep.subr.bf16.mxu0 0
        %3541 = vmatpush1.bf16.msra.mxu0 0
        %3542 = vmatprep.subr.bf16.mxu0 0
        %3543 = vmatpush1.bf16.msra.mxu0 0
        %3544 = vmatprep.subr.bf16.mxu0 0
        %3545 = vmatpush1.bf16.msra.mxu0 0
        %3546 = vmatprep.subr.bf16.mxu0 0
        %3547 = vmatpush1.bf16.msra.mxu0 0
        %3548 = vmatprep.subr.bf16.mxu0 0
        %3549 = vmatpush1.bf16.msra.mxu0 0
        %3550 = vmatprep.mubr.bf16.mxu0 0
        %3551 = vmatmul.mubr.bf16.gmra.mrb[0].mxu0 %v3284
        %v3552 = vpop.f32.mrb[0].mxu0
        %v3553 = vadd.f32 %v3512, %v3552
        %v3554 = vpop.f32.mrb[0].mxu0
        %v3555 = vpop.f32.mrb[0].mxu0
        %v3556 = vadd.f32 %v3515, %v3555
        %v3557 = vpop.f32.mrb[0].mxu0
        %3558 = vdwg.mxu0
        %v3559 = vmax.f32 %v3553, 1e-05
        %v3560 = vmax.f32 %v3556, 1e-05
        %v3561 = vlog2.pop %v3559
        %v3562 = vmul.f32 %v3561, 0.6931472
        %v3563 = vlog2.pop %v3560
        %v3564 = vmul.f32 %v3563, 0.6931472
        %3565 = vst [vmem:[%s283] sm:$0xff] %v3562
        %3566 = vst [vmem:[%s283 + $0x8] sm:$0xff] %v3564
        %s3567 = sand.u32 %s127, 1
        %s3568 = scalar_lea.sflag [#allocation4], %s3567
        %s3569 = sand.u32 %s127, 1
        %s3570 = smul.addr %s3569, 16
        %s3571 = scalar_lea.vmem [#allocation10], %s3570
        // Predicated region
        $region53: #{tpu_custom_call.1} parent=35 // pred_check
          %p3572 = pneg %p137
        $region54: #{tpu_custom_call.1} parent=35 // pred_check_branch
          %3574 = sbr.rel (%p3572) target = $region56
        $region55: #{tpu_custom_call.1} parent=35 // pred_region
          %s3575 = smul.u32 2, %s25
          %s3577 = ssub.s32 256, 256
          %3578 = vsyncadd %s3568, %s3577
          %s3579 = smul.addr %s3575, 128
          %s3580 = scalar_lea.hbm %s4, %s3579
          %s3581 = sshll.u32 %s3571, 4
          %s3582 = int_to_ptr.vmem [resolvable:$true] %s3581
          %3587 = dma.vmem_to_hbm [thread:$0]  %s3582, 256, %s3580, %s3568, 128, 128, 8
        $region56: #{tpu_custom_call.1} parent=35 // pred_fallthru
          _
      $region36: #{tpu_custom_call.1} parent=5 // pred_fallthru
        _
      %p3588 = scmp.le.s32.totalorder 2, %s20
      // Predicated region
      $region57: #{tpu_custom_call.1} parent=5 // pred_check
        %p3589 = pneg %p3588
      $region58: #{tpu_custom_call.1} parent=5 // pred_check_branch
        %3591 = sbr.rel (%p3589) target = $region60
      $region59: #{tpu_custom_call.1} parent=5 // pred_region
        %s3592 = ssub.s32 %s20, 2
        // Predicated region
        $region61: #{tpu_custom_call.1} parent=59 // pred_check
          %p3593 = pneg %p143
        $region62: #{tpu_custom_call.1} parent=59 // pred_check_branch
          %3595 = sbr.rel (%p3593) target = $region64
        $region63: #{tpu_custom_call.1} parent=59 // pred_region
          %s3596 = sand.u32 %s128, 1
          %s3597 = scalar_lea.sflag [#allocation4], %s3596
          %s3598 = sand.u32 %s128, 1
          %s3599 = smul.addr %s3598, 16
          %s3600 = scalar_lea.vmem [#allocation10], %s3599
          %3601 = dma.done %s3597, 256
        $region64: #{tpu_custom_call.1} parent=59 // pred_fallthru
          _
      $region60: #{tpu_custom_call.1} parent=5 // pred_fallthru
        _
    $region6: #{tpu_custom_call.1} parent=1 // loop_footer
      %s24 = sadd.s32 1, %s20
    $region7: #{tpu_custom_call.1} parent=1 // loop_footer_branch
      %19 = sbr.rel target = $region3
    $region8: #{tpu_custom_call.1} parent=1 // loop_exit
      _
    %3602 = vsyncpa [#allocation3], 1
    %s3603 = scalar_lea.sflag [#allocation3], 1
    %3604 = vsyncpa %s3603, 1
    %3605 = vsyncpa [#allocation6], 1
    %s3606 = scalar_lea.sflag [#allocation6], 1
    %3607 = vsyncpa %s3606, 1
    %3608 = vsyncpa [#allocation9], 1
    %3609 = vsyncpa [#allocation4], 1
    %s3610 = scalar_lea.sflag [#allocation4], 1
    %3611 = vsyncpa %s3610, 1

</llo_original>
